<compile_context>
chip_gen: v7x
topology: tpu7x:2x2x1
jax: 0.10.0
libtpu: 0.0.40
codegen_flags: <defaults>
</compile_context>

<pallas_src>
import math
import functools

import jax
import jax.numpy as jnp
import numpy as np
from jax.experimental import pallas as pl
from jax.experimental.pallas import tpu as pltpu

EPS_LN = 1e-5
EPS_BN = 1e-5
LANE = 128
NEG_INF = -1e30

# bias_pack row layout (shared between pad_params and _mix_kernel)
_R_BG, _R_BN1S, _R_BN1T, _R_BO, _R_BN2S, _R_BN2T, _R_B2, _R_BN3S, _R_BN3T = range(9)


def _round_up(x, m):
    return (x + m - 1) // m * m


def _vmem_limit_bytes():
    """Generation-aware VMEM budget (~75% of physical)."""
    try:
        cap = pltpu.get_tpu_info().vmem_capacity_bytes
        return int(cap) * 3 // 4
    except Exception:
        return 48 * 1024 * 1024


def _cparams(dims):
    return pltpu.CompilerParams(dimension_semantics=dims,
                                vmem_limit_bytes=_vmem_limit_bytes())


def _pick_tiles(n_pad):
    """KV tile: 256-wide MXU output when possible.  Row tile: 256 halves
    K/V/XW re-streaming, but keep >=2 row tiles so the 'parallel' axis can
    split across v7x's two TensorCores."""
    tk = 256 if n_pad % 256 == 0 else 128
    tm = 256 if (n_pad % 256 == 0 and n_pad // 256 >= 2) else 128
    return tm, tk


# ----------------------------------------------------------------------------
# Kernels
# ----------------------------------------------------------------------------
def _embed_kernel(x_ref, pe_ref, wi_ref, bi_ref, wp_ref, bp_ref,
                  g_ref, be_ref, out_ref, *, hidden):
    """h0 = [input_lin(x) | LayerNorm(pe_lin(pe))] written lane-dense (bf16).

    The pe branch lands in columns [hidden, 2*hidden) by weight padding, so no
    concatenate / relayout is needed; LN stats cover the real pe channels only.
    """
    xi = jnp.dot(x_ref[...], wi_ref[...],
                 preferred_element_type=jnp.float32) + bi_ref[...]
    p = jnp.dot(pe_ref[...], wp_ref[...],
                preferred_element_type=jnp.float32) + bp_ref[...]
    col = jax.lax.broadcasted_iota(jnp.int32, p.shape, 1)
    pe_mask = jnp.logical_and(col >= hidden, col < 2 * hidden).astype(jnp.float32)
    inv_h = 1.0 / float(hidden)
    mu = jnp.sum(p * pe_mask, axis=-1, keepdims=True) * inv_h
    var = jnp.sum(((p - mu) ** 2) * pe_mask, axis=-1, keepdims=True) * inv_h
    p_n = (p - mu) * jax.lax.rsqrt(var + EPS_LN) * g_ref[...] + be_ref[...]
    out_ref[...] = (xi + p_n).astype(out_ref.dtype)   # disjoint column ranges


def _proj_kernel(h_ref, w_ref, b_ref, o_ref):
    """Row-tiled fused projection: [Q*scale | K | V | X@Wg] in ONE MXU pass
    with a 4*C_pad-wide (lane-dense) output."""
    o = jnp.dot(h_ref[...], w_ref[...],
                preferred_element_type=jnp.float32) + b_ref[...]
    o_ref[...] = o.astype(jnp.bfloat16)


def _mix_kernel(flags_ref, fetch_ref,
                x_ref, q_ref, a_ref, k_ref, v_ref, xw_ref,
                wo_ref, w1_ref, b1_ref, w2_ref, bias_ref,
                out_ref, acc_ref, gcn_ref, m_ref, l_ref, *, n_real):
    """One GPSConv layer, tiled over (row tiles, KV tiles).

    Flash-style online-softmax attention + blocked SpMM along the KV axis; the
    SpMM is skipped (and its A DMA elided via the fetch table) for all-zero A
    blocks.  Branch-combine + MLP + folded BatchNorms fuse into the last step.
    """
    ridx = pl.program_id(0)
    kidx = pl.program_id(1)
    nk = pl.num_programs(1)

    @pl.when(kidx == 0)
    def _():
        acc_ref[...] = jnp.zeros_like(acc_ref)
        gcn_ref[...] = jnp.zeros_like(gcn_ref)
        m_ref[...] = jnp.full_like(m_ref, NEG_INF)
        l_ref[...] = jnp.zeros_like(l_ref)

    # ---- attention: scores for this KV tile (scale folded into Q) ----------
    s = jax.lax.dot_general(q_ref[...], k_ref[...], (((1,), (1,)), ((), ())),
                            preferred_element_type=jnp.float32)
    tk_cols = s.shape[1]
    col = kidx * tk_cols + jax.lax.broadcasted_iota(jnp.int32, s.shape, 1)
    s = jnp.where(col < n_real, s, NEG_INF)

    m_new = jnp.maximum(m_ref[...], jnp.max(s, axis=-1, keepdims=True))
    alpha = jnp.exp(m_ref[...] - m_new)
    p = jnp.exp(s - m_new)            # masked columns underflow to exactly 0
    l_ref[...] = alpha * l_ref[...] + jnp.sum(p, axis=-1, keepdims=True)
    acc_ref[...] = alpha * acc_ref[...] + jnp.dot(
        p.astype(jnp.bfloat16), v_ref[...], preferred_element_type=jnp.float32)
    m_ref[...] = m_new

    # ---- GCN branch: blocked SpMM, skipped for all-zero A blocks -----------
    @pl.when(flags_ref[ridx * nk + kidx] == 1)
    def _():
        gcn_ref[...] += jnp.dot(a_ref[...], xw_ref[...],
                                preferred_element_type=jnp.float32)

    # ---- epilogue on the last KV tile ---------------------------------------
    @pl.when(kidx == nk - 1)
    def _():
        b = bias_ref[...]

        def row(r):
            return b[r:r + 1, :]

        x = x_ref[...].astype(jnp.float32)

        # global attention branch: out-proj + residual + folded BN2
        inv_l = pl.reciprocal(l_ref[...], approx=True)
        attn = acc_ref[...] * inv_l
        h_attn = jnp.dot(attn.astype(jnp.bfloat16), wo_ref[...],
                         preferred_element_type=jnp.float32) + row(_R_BO)
        h_attn = (h_attn + x) * row(_R_BN2S) + row(_R_BN2T)

        # local GCN branch: bias + residual + folded BN1
        h_local = (gcn_ref[...] + row(_R_BG) + x) * row(_R_BN1S) + row(_R_BN1T)

        # combine + MLP residual + folded BN3
        out = h_local + h_attn
        m = jnp.maximum(
            jnp.dot(out.astype(jnp.bfloat16), w1_ref[...],
                    preferred_element_type=jnp.float32) + b1_ref[...], 0.0)
        m = jnp.dot(m.astype(jnp.bfloat16), w2_ref[...],
                    preferred_element_type=jnp.float32) + row(_R_B2)
        out_ref[...] = ((out + m) * row(_R_BN3S) + row(_R_BN3T)).astype(out_ref.dtype)


def _head_kernel(x_ref, w_ref, b_ref, out_ref, *, n_classes):
    """Final Linear + LogSoftmax over the real (unpadded) classes."""
    logits = jnp.dot(x_ref[...], w_ref[...],
                     preferred_element_type=jnp.float32) + b_ref[...]
    col = jax.lax.broadcasted_iota(jnp.int32, logits.shape, 1)
    logits = jnp.where(col < n_classes, logits, NEG_INF)
    z = logits - jnp.max(logits, axis=-1, keepdims=True)
    lse = jnp.log(jnp.sum(jnp.exp(z), axis=-1, keepdims=True))
    out_ref[...] = z - lse


# ----------------------------------------------------------------------------
# Wrappers
# ----------------------------------------------------------------------------
def embed(x_p, pe_p, ep, *, hidden, tm):
    n_pad, f_pad = x_p.shape
    pe_pad = pe_p.shape[1]
    c_pad = ep["wi"].shape[1]
    row = lambda i: (i, 0)
    rep = lambda i: (0, 0)
    return pl.pallas_call(
        functools.partial(_embed_kernel, hidden=hidden),
        out_shape=jax.ShapeDtypeStruct((n_pad, c_pad), jnp.bfloat16),
        grid=(n_pad // tm,),
        in_specs=[
            pl.BlockSpec((tm, f_pad), row),
            pl.BlockSpec((tm, pe_pad), row),
            pl.BlockSpec((f_pad, c_pad), rep),
            pl.BlockSpec((1, c_pad), rep),
            pl.BlockSpec((pe_pad, c_pad), rep),
            pl.BlockSpec((1, c_pad), rep),
            pl.BlockSpec((1, c_pad), rep),
            pl.BlockSpec((1, c_pad), rep),
        ],
        out_specs=pl.BlockSpec((tm, c_pad), row),
        compiler_params=_cparams(("parallel",)),
    )(x_p, pe_p, ep["wi"], ep["bi"], ep["wp"], ep["bp"], ep["ln_g"], ep["ln_b"])


def gps_layer_proj(h, lp, *, tm):
    """Single fused Q|K|V|XW projection -> (N_pad, 4*C_pad) bf16."""
    n_pad, c_pad = h.shape
    c4 = lp["w_qkvg"].shape[1]
    row = lambda i: (i, 0)
    rep = lambda i: (0, 0)
    return pl.pallas_call(
        _proj_kernel,
        out_shape=jax.ShapeDtypeStruct((n_pad, c4), jnp.bfloat16),
        grid=(n_pad // tm,),
        in_specs=[
            pl.BlockSpec((tm, c_pad), row),
            pl.BlockSpec((c_pad, c4), rep),
            pl.BlockSpec((1, c4), rep),
        ],
        out_specs=pl.BlockSpec((tm, c4), row),
        compiler_params=_cparams(("parallel",)),
    )(h, lp["w_qkvg"], lp["b_qkvg"])


def gps_layer_mix(h, qkvxw, a_p, nz_flags, a_fetch, lp, *, n_real, tm, tk):
    n_pad, c_pad = h.shape
    m_pad = lp["w1"].shape[1]
    nki = n_pad // tk

    rowi = lambda i, kk, fl, ft: (i, 0)
    rep = lambda i, kk, fl, ft: (0, 0)

    grid_spec = pltpu.PrefetchScalarGridSpec(
        num_scalar_prefetch=2,
        grid=(n_pad // tm, nki),
        in_specs=[
            pl.BlockSpec((tm, c_pad), rowi),                               # x (residual rows, bf16)
            pl.BlockSpec((tm, c_pad), lambda i, kk, fl, ft: (i, 0)),       # Q cols of packed proj
            pl.BlockSpec((tm, tk),
                         lambda i, kk, fl, ft: (i, ft[i * nki + kk])),     # A block (DMA elided when index repeats)
            pl.BlockSpec((tk, c_pad), lambda i, kk, fl, ft: (kk, 1)),      # K cols
            pl.BlockSpec((tk, c_pad), lambda i, kk, fl, ft: (kk, 2)),      # V cols
            pl.BlockSpec((tk, c_pad), lambda i, kk, fl, ft: (kk, 3)),      # XW cols
            pl.BlockSpec((c_pad, c_pad), rep),                             # wo
            pl.BlockSpec((c_pad, m_pad), rep),                             # w1
            pl.BlockSpec((1, m_pad), rep),                                 # b1
            pl.BlockSpec((m_pad, c_pad), rep),                             # w2
            pl.BlockSpec((16, c_pad), rep),                                # packed biases / folded BN
        ],
        out_specs=pl.BlockSpec((tm, c_pad), rowi),
        scratch_shapes=[
            pltpu.VMEM((tm, c_pad), jnp.float32),  # attention accumulator
            pltpu.VMEM((tm, c_pad), jnp.float32),  # GCN (SpMM) accumulator
            pltpu.VMEM((tm, 1), jnp.float32),      # running max
            pltpu.VMEM((tm, 1), jnp.float32),      # running denom
        ],
    )
    return pl.pallas_call(
        functools.partial(_mix_kernel, n_real=n_real),
        out_shape=jax.ShapeDtypeStruct((n_pad, c_pad), jnp.bfloat16),
        grid_spec=grid_spec,
        compiler_params=_cparams(("parallel", "arbitrary")),
    )(nz_flags, a_fetch,
      h, qkvxw, a_p, qkvxw, qkvxw, qkvxw,
      lp["wo"], lp["w1"], lp["b1"], lp["w2"], lp["bias_pack"])


def head(h, w, b, *, n_classes, tm):
    n_pad, c_pad = h.shape
    ncls_pad = w.shape[1]
    row = lambda i: (i, 0)
    rep = lambda i: (0, 0)
    return pl.pallas_call(
        functools.partial(_head_kernel, n_classes=n_classes),
        out_shape=jax.ShapeDtypeStruct((n_pad, ncls_pad), jnp.float32),
        grid=(n_pad // tm,),
        in_specs=[
            pl.BlockSpec((tm, c_pad), row),
            pl.BlockSpec((c_pad, ncls_pad), rep),
            pl.BlockSpec((1, ncls_pad), rep),
        ],
        out_specs=pl.BlockSpec((tm, ncls_pad), row),
        compiler_params=_cparams(("parallel",)),
    )(h, w, b)


def gps_forward(x_p, pe_p, a_p, nz_flags, a_fetch, pp, *,
                n_real, hidden, n_classes, tm, tk):
    h = embed(x_p, pe_p, pp["embed"], hidden=hidden, tm=tm)
    for lp in pp["layers"]:
        qkvxw = gps_layer_proj(h, lp, tm=tm)
        h = gps_layer_mix(h, qkvxw, a_p, nz_flags, a_fetch, lp,
                          n_real=n_real, tm=tm, tk=tk)
    return head(h, pp["w_out"], pp["b_out"], n_classes=n_classes, tm=tm)


# ----------------------------------------------------------------------------
# Glue: adjacency, A-block schedule, parameter init / padding, f32 reference
# ----------------------------------------------------------------------------
def dense_gcn_adj(edge_index, num_nodes):
    src, dst = edge_index
    a = jnp.zeros((num_nodes, num_nodes), jnp.float32)
    a = a.at[dst, src].add(1.0)
    a = a + jnp.eye(num_nodes, dtype=jnp.float32)          # self-loops
    deg = jnp.sum(a, axis=1)
    dinv = jnp.where(deg > 0, jax.lax.rsqrt(deg), 0.0)
    return dinv[:, None] * a * dinv[None, :]


def a_block_schedule(a_dense_pad, n_pad, tm, tk):
    """Per-(row_tile, kv_tile) nonzero flag + carry-forward fetch index so the
    A DMA can be elided for empty blocks (Pallas skips refetch when the block
    index is unchanged between consecutive grid steps)."""
    nri, nki = n_pad // tm, n_pad // tk
    a = np.asarray(a_dense_pad).reshape(nri, tm, nki, tk)
    nz = np.abs(a).sum(axis=(1, 3)) > 0                    # (nri, nki) bool
    flags = nz.astype(np.int32)
    kk = np.arange(nki, dtype=np.int32)[None, :]
    fetch = np.maximum.accumulate(np.where(nz, kk, -1), axis=1)
    fetch = np.maximum(fetch, 0).astype(np.int32)
    return jnp.asarray(flags.reshape(-1)), jnp.asarray(fetch.reshape(-1))


def init_params(key, num_features, hidden, pe_dim, num_classes, num_layers):
    keys = iter(jax.random.split(key, 128))

    def lin(kin, kout):
        w = 0.2 * jax.random.normal(next(keys), (kin, kout), jnp.float32)
        b = 0.1 * jax.random.normal(next(keys), (1, kout), jnp.float32)
        return w, b

    params = {}
    params["wi"], params["bi"] = lin(num_features, hidden)   # input_lin
    params["wp"], params["bp"] = lin(pe_dim, hidden)         # pe_lin
    params["ln_g"] = 1.0 + 0.1 * jax.random.normal(next(keys), (1, hidden), jnp.float32)
    params["ln_b"] = 0.1 * jax.random.normal(next(keys), (1, hidden), jnp.float32)

    c = 2 * hidden
    layers = []
    for _ in range(num_layers):
        lp = {}
        lp["wg"], lp["bg"] = lin(c, c)                       # GCNConv
        for name in ("bn1", "bn2", "bn3"):
            lp[f"{name}_w"] = 1.0 + 0.1 * jax.random.normal(next(keys), (1, c), jnp.float32)
            lp[f"{name}_b"] = 0.1 * jax.random.normal(next(keys), (1, c), jnp.float32)
            lp[f"{name}_m"] = 0.1 * jax.random.normal(next(keys), (1, c), jnp.float32)
            lp[f"{name}_v"] = 1.0 + 0.1 * jnp.abs(jax.random.normal(next(keys), (1, c), jnp.float32))
        lp["wq"], lp["bq"] = lin(c, c)                       # MHA in-proj
        lp["wk"], lp["bk"] = lin(c, c)
        lp["wv"], lp["bv"] = lin(c, c)
        lp["wo"], lp["bo"] = lin(c, c)                       # MHA out-proj
        lp["w1"], lp["b1"] = lin(c, 2 * c)                   # GPSConv MLP
        lp["w2"], lp["b2"] = lin(2 * c, c)
        layers.append(lp)
    params["layers"] = layers
    params["w_out"], params["b_out"] = lin(c, num_classes)   # final lin
    return params


def pad_params(params, hidden):
    """Zero-pad to lane-dense widths, fuse the four projection weights, fold
    BN to scale/shift, fold the attention scale into Q, pack bias vectors,
    cast matmul weights to bf16."""
    C = 2 * hidden
    F = params["wi"].shape[0]
    PE = params["wp"].shape[0]
    NCLS = params["w_out"].shape[1]
    C_pad = _round_up(C, LANE)
    M_pad = _round_up(2 * C, LANE)
    F_pad = _round_up(F, LANE)
    PE_pad = _round_up(PE, LANE)
    NCLS_pad = _round_up(NCLS, LANE)

    def pad2(a, r, c, dtype=None):
        out = jnp.zeros((r, c), jnp.float32).at[:a.shape[0], :a.shape[1]].set(a)
        return out.astype(dtype) if dtype is not None else out

    def place_cols(a, r, c, c0, dtype=None):
        out = jnp.zeros((r, c), jnp.float32).at[:a.shape[0], c0:c0 + a.shape[1]].set(a)
        return out.astype(dtype) if dtype is not None else out

    ep = {
        "wi": pad2(params["wi"], F_pad, C_pad, jnp.bfloat16),
        "bi": pad2(params["bi"], 1, C_pad),
        # pe branch lands in columns [hidden, 2*hidden)
        "wp": place_cols(params["wp"], PE_pad, C_pad, hidden, jnp.bfloat16),
        "bp": place_cols(params["bp"], 1, C_pad, hidden),
        "ln_g": place_cols(params["ln_g"], 1, C_pad, hidden),
        "ln_b": place_cols(params["ln_b"], 1, C_pad, hidden),
    }

    scale = 1.0 / math.sqrt(C)
    layers = []
    for lp in params["layers"]:
        # fused [Q*scale | K | V | XW] projection weight / bias
        w_qkvg = jnp.zeros((C_pad, 4 * C_pad), jnp.float32)
        b_qkvg = jnp.zeros((1, 4 * C_pad), jnp.float32)
        for blk, (w, b) in enumerate([(lp["wq"] * scale, lp["bq"] * scale),
                                      (lp["wk"], lp["bk"]),
                                      (lp["wv"], lp["bv"]),
                                      (lp["wg"], None)]):
            w_qkvg = w_qkvg.at[:C, blk * C_pad: blk * C_pad + C].set(w)
            if b is not None:
                b_qkvg = b_qkvg.at[:, blk * C_pad: blk * C_pad + C].set(b)

        def bn_fold(name, lp=lp):
            s = lp[f"{name}_w"] * jax.lax.rsqrt(lp[f"{name}_v"] + EPS_BN)
            t = lp[f"{name}_b"] - lp[f"{name}_m"] * s
            return s, t
        bn1s, bn1t = bn_fold("bn1")
        bn2s, bn2t = bn_fold("bn2")
        bn3s, bn3t = bn_fold("bn3")

        # packed bias / folded-BN rows (one operand instead of ~12)
        bias_pack = jnp.zeros((16, C_pad), jnp.float32)
        rows = {_R_BG: lp["bg"], _R_BN1S: bn1s, _R_BN1T: bn1t,
                _R_BO: lp["bo"], _R_BN2S: bn2s, _R_BN2T: bn2t,
                _R_B2: lp["b2"], _R_BN3S: bn3s, _R_BN3T: bn3t}
        for r, vrow in rows.items():
            bias_pack = bias_pack.at[r, :vrow.shape[1]].set(vrow[0])

        layers.append({
            "w_qkvg": w_qkvg.astype(jnp.bfloat16),
            "b_qkvg": b_qkvg,
            "wo": pad2(lp["wo"], C_pad, C_pad, jnp.bfloat16),
            "w1": pad2(lp["w1"], C_pad, M_pad, jnp.bfloat16),
            "b1": pad2(lp["b1"], 1, M_pad),
            "w2": pad2(lp["w2"], M_pad, C_pad, jnp.bfloat16),
            "bias_pack": bias_pack,
        })

    return {
        "embed": ep,
        "layers": layers,
        "w_out": pad2(params["w_out"], C_pad, NCLS_pad, jnp.bfloat16),
        "b_out": pad2(params["b_out"], 1, NCLS_pad),
        "dims": dict(C_pad=C_pad, M_pad=M_pad, F_pad=F_pad,
                     PE_pad=PE_pad, NCLS_pad=NCLS_pad),
    }


def reference_forward(x, pe, a_hat, params):
    """Pure-JAX f32 mirror of the PyTorch forward (eval mode)."""
    def bn(h, p, name):
        return ((h - p[f"{name}_m"]) * jax.lax.rsqrt(p[f"{name}_v"] + EPS_BN)
                * p[f"{name}_w"] + p[f"{name}_b"])

    xi = x @ params["wi"] + params["bi"]
    p = pe @ params["wp"] + params["bp"]
    mu = jnp.mean(p, axis=-1, keepdims=True)
    var = jnp.mean((p - mu) ** 2, axis=-1, keepdims=True)
    p = (p - mu) * jax.lax.rsqrt(var + EPS_LN) * params["ln_g"] + params["ln_b"]
    h = jnp.concatenate([xi, p], axis=1)

    c = h.shape[1]
    scale = 1.0 / math.sqrt(c)
    for lp in params["layers"]:
        x_in = h
        h1 = a_hat @ (x_in @ lp["wg"]) + lp["bg"]
        h1 = bn(h1 + x_in, lp, "bn1")

        q = x_in @ lp["wq"] + lp["bq"]
        k = x_in @ lp["wk"] + lp["bk"]
        v = x_in @ lp["wv"] + lp["bv"]
        s = (q @ k.T) * scale
        s = s - jnp.max(s, axis=-1, keepdims=True)
        pw = jnp.exp(s)
        pw = pw / jnp.sum(pw, axis=-1, keepdims=True)
        h2 = (pw @ v) @ lp["wo"] + lp["bo"]
        h2 = bn(h2 + x_in, lp, "bn2")

        out = h1 + h2
        m = jnp.maximum(out @ lp["w1"] + lp["b1"], 0.0) @ lp["w2"] + lp["b2"]
        h = bn(out + m, lp, "bn3")

    logits = h @ params["w_out"] + params["b_out"]
    z = logits - jnp.max(logits, axis=1, keepdims=True)
    return z - jnp.log(jnp.sum(jnp.exp(z), axis=1, keepdims=True))


# ----------------------------------------------------------------------------
if __name__ == "__main__":
    # nodes, node-features, hidden, pe-dims, classes, layers
    N, F, H, PE, NCLS, L = 200, 6, 4, 4, 3, 2
    N_pad = _round_up(N, LANE)
    tm, tk = _pick_tiles(N_pad)

    key = jax.random.PRNGKey(0)
    k1, k2, k3 = jax.random.split(key, 3)
    x = jax.random.normal(k1, (N, F), jnp.float32)
    pe = jax.random.normal(k2, (N, PE), jnp.float32)     # random_walk_pe

    # bidirectional ring graph
    src = jnp.arange(N, dtype=jnp.int32)
    dst = (src + 1) % N
    edge_index = jnp.stack([jnp.concatenate([src, dst]),
                            jnp.concatenate([dst, src])])
    a_hat = dense_gcn_adj(edge_index, N)

    params = init_params(k3, F, H, PE, NCLS, L)
    pp = pad_params(params, H)
    dims = pp["dims"]

    # pad inputs to lane-dense / row-tiled shapes (bf16 MXU operands)
    x_p = jnp.zeros((N_pad, dims["F_pad"]), jnp.float32).at[:N, :F].set(x)
    x_p = x_p.astype(jnp.bfloat16)
    pe_p = jnp.zeros((N_pad, dims["PE_pad"]), jnp.float32).at[:N, :PE].set(pe)
    pe_p = pe_p.astype(jnp.bfloat16)
    a_f32 = jnp.zeros((N_pad, N_pad), jnp.float32).at[:N, :N].set(a_hat)
    a_p = a_f32.astype(jnp.bfloat16)
    nz_flags, a_fetch = a_block_schedule(a_f32, N_pad, tm, tk)

    out_full = gps_forward(x_p, pe_p, a_p, nz_flags, a_fetch, pp,
                           n_real=N, hidden=H, n_classes=NCLS, tm=tm, tk=tk)
    out_full = jax.block_until_ready(out_full)
    out = np.asarray(out_full)[:N, :NCLS]

    ref = np.asarray(reference_forward(x, pe, a_hat, params))
    # bf16 MXU operands + bf16 activation storage vs f32 reference
    np.testing.assert_allclose(out, ref, rtol=5e-2, atol=1.5e-1)
    print("KERNEL_OK")
</pallas_src>

<mosaic_0001>
module attributes {stable_mosaic.version = 11 : i64} {
  func.func @_embed_kernel(%arg0: i32, %arg1: memref<128x128xbf16, #tpu.memory_space<vmem>>, %arg2: memref<128x128xbf16, #tpu.memory_space<vmem>>, %arg3: memref<128x128xbf16, #tpu.memory_space<vmem>>, %arg4: memref<1x128xf32, #tpu.memory_space<vmem>>, %arg5: memref<128x128xbf16, #tpu.memory_space<vmem>>, %arg6: memref<1x128xf32, #tpu.memory_space<vmem>>, %arg7: memref<1x128xf32, #tpu.memory_space<vmem>>, %arg8: memref<1x128xf32, #tpu.memory_space<vmem>>, %arg9: memref<128x128xbf16, #tpu.memory_space<vmem>>) attributes {dimension_semantics = [#tpu.dimension_semantics<parallel>], iteration_bounds = array<i64: 2>, scalar_prefetch = 0 : i64, scratch_operands = 0 : i64, tpu.core_type = #tpu.core_type<tc>, window_params = [{transform_indices = @transform_0, window_bounds = array<i64: 128, 128>}, {transform_indices = @transform_1, window_bounds = array<i64: 128, 128>}, {pipeline_mode = #tpu.pipeline_mode<synchronous>, transform_indices = @transform_2, window_bounds = array<i64: 128, 128>}, {pipeline_mode = #tpu.pipeline_mode<synchronous>, transform_indices = @transform_3, window_bounds = array<i64: 1, 128>}, {pipeline_mode = #tpu.pipeline_mode<synchronous>, transform_indices = @transform_4, window_bounds = array<i64: 128, 128>}, {pipeline_mode = #tpu.pipeline_mode<synchronous>, transform_indices = @transform_5, window_bounds = array<i64: 1, 128>}, {pipeline_mode = #tpu.pipeline_mode<synchronous>, transform_indices = @transform_6, window_bounds = array<i64: 1, 128>}, {pipeline_mode = #tpu.pipeline_mode<synchronous>, transform_indices = @transform_7, window_bounds = array<i64: 1, 128>}, {transform_indices = @transform_8, window_bounds = array<i64: 128, 128>}]} {
    %c0 = arith.constant 0 : index
    %c0_0 = arith.constant 0 : index
    %0 = vector.load %arg1[%c0, %c0_0] : memref<128x128xbf16, #tpu.memory_space<vmem>>, vector<128x128xbf16>
    %c0_1 = arith.constant 0 : index
    %c0_2 = arith.constant 0 : index
    %1 = vector.load %arg3[%c0_1, %c0_2] : memref<128x128xbf16, #tpu.memory_space<vmem>>, vector<128x128xbf16>
    %cst = arith.constant dense<0.000000e+00> : vector<128x128xf32>
    %2 = tpu.matmul %0, %1, %cst {dimension_numbers = #tpu.dot_dimension_numbers<[1], [0], [0], [1], [0, 0, 1, 1], [], []>} : vector<128x128xbf16>, vector<128x128xbf16>, vector<128x128xf32> -> vector<128x128xf32>
    %c0_3 = arith.constant 0 : index
    %c0_4 = arith.constant 0 : index
    %3 = vector.load %arg4[%c0_3, %c0_4] : memref<1x128xf32, #tpu.memory_space<vmem>>, vector<1x128xf32>
    %4 = vector.broadcast %3 : vector<1x128xf32> to vector<128x128xf32>
    %5 = arith.addf %2, %4 : vector<128x128xf32>
    %c0_5 = arith.constant 0 : index
    %c0_6 = arith.constant 0 : index
    %6 = vector.load %arg2[%c0_5, %c0_6] : memref<128x128xbf16, #tpu.memory_space<vmem>>, vector<128x128xbf16>
    %c0_7 = arith.constant 0 : index
    %c0_8 = arith.constant 0 : index
    %7 = vector.load %arg5[%c0_7, %c0_8] : memref<128x128xbf16, #tpu.memory_space<vmem>>, vector<128x128xbf16>
    %cst_9 = arith.constant dense<0.000000e+00> : vector<128x128xf32>
    %8 = tpu.matmul %6, %7, %cst_9 {dimension_numbers = #tpu.dot_dimension_numbers<[1], [0], [0], [1], [0, 0, 1, 1], [], []>} : vector<128x128xbf16>, vector<128x128xbf16>, vector<128x128xf32> -> vector<128x128xf32>
    %c0_10 = arith.constant 0 : index
    %c0_11 = arith.constant 0 : index
    %9 = vector.load %arg6[%c0_10, %c0_11] : memref<1x128xf32, #tpu.memory_space<vmem>>, vector<1x128xf32>
    %10 = vector.broadcast %9 : vector<1x128xf32> to vector<128x128xf32>
    %11 = arith.addf %8, %10 : vector<128x128xf32>
    %12 = tpu.iota {dimensions = array<i32: 1>} : vector<128x128xi32>
    %c4_i32 = arith.constant 4 : i32
    %13 = vector.broadcast %c4_i32 : i32 to vector<128x128xi32>
    %14 = arith.cmpi sge, %12, %13 : vector<128x128xi32>
    %c8_i32 = arith.constant 8 : i32
    %15 = vector.broadcast %c8_i32 : i32 to vector<128x128xi32>
    %16 = arith.cmpi slt, %12, %15 : vector<128x128xi32>
    %17 = arith.andi %14, %16 : vector<128x128xi1>
    %18 = arith.extui %17 : vector<128x128xi1> to vector<128x128xi32>
    %19 = arith.sitofp %18 : vector<128x128xi32> to vector<128x128xf32>
    %20 = arith.mulf %11, %19 : vector<128x128xf32>
    %cst_12 = arith.constant dense<0.000000e+00> : vector<128xf32>
    %21 = vector.multi_reduction <add>, %20, %cst_12 [1] : vector<128x128xf32> to vector<128xf32>
    %22 = vector.shape_cast %21 : vector<128xf32> to vector<128x1xf32>
    %cst_13 = arith.constant 2.500000e-01 : f32
    %23 = vector.broadcast %cst_13 : f32 to vector<128x1xf32>
    %24 = arith.mulf %22, %23 : vector<128x1xf32>
    %25 = vector.broadcast %24 : vector<128x1xf32> to vector<128x128xf32>
    %26 = arith.subf %11, %25 : vector<128x128xf32>
    %27 = arith.mulf %26, %26 : vector<128x128xf32>
    %28 = arith.mulf %27, %19 : vector<128x128xf32>
    %cst_14 = arith.constant dense<0.000000e+00> : vector<128xf32>
    %29 = vector.multi_reduction <add>, %28, %cst_14 [1] : vector<128x128xf32> to vector<128xf32>
    %30 = vector.shape_cast %29 : vector<128xf32> to vector<128x1xf32>
    %cst_15 = arith.constant 2.500000e-01 : f32
    %31 = vector.broadcast %cst_15 : f32 to vector<128x1xf32>
    %32 = arith.mulf %30, %31 : vector<128x1xf32>
    %33 = vector.broadcast %24 : vector<128x1xf32> to vector<128x128xf32>
    %34 = arith.subf %11, %33 : vector<128x128xf32>
    %cst_16 = arith.constant 9.99999974E-6 : f32
    %35 = vector.broadcast %cst_16 : f32 to vector<128x1xf32>
    %36 = arith.addf %32, %35 : vector<128x1xf32>
    %37 = math.rsqrt %36 : vector<128x1xf32>
    %38 = vector.broadcast %37 : vector<128x1xf32> to vector<128x128xf32>
    %39 = arith.mulf %34, %38 : vector<128x128xf32>
    %c0_17 = arith.constant 0 : index
    %c0_18 = arith.constant 0 : index
    %40 = vector.load %arg7[%c0_17, %c0_18] : memref<1x128xf32, #tpu.memory_space<vmem>>, vector<1x128xf32>
    %41 = vector.broadcast %40 : vector<1x128xf32> to vector<128x128xf32>
    %42 = arith.mulf %39, %41 : vector<128x128xf32>
    %c0_19 = arith.constant 0 : index
    %c0_20 = arith.constant 0 : index
    %43 = vector.load %arg8[%c0_19, %c0_20] : memref<1x128xf32, #tpu.memory_space<vmem>>, vector<1x128xf32>
    %44 = vector.broadcast %43 : vector<1x128xf32> to vector<128x128xf32>
    %45 = arith.addf %42, %44 : vector<128x128xf32>
    %46 = arith.addf %5, %45 : vector<128x128xf32>
    %47 = arith.truncf %46 : vector<128x128xf32> to vector<128x128xbf16>
    %c0_21 = arith.constant 0 : index
    %c0_22 = arith.constant 0 : index
    %48 = vector.load %arg9[%c0_21, %c0_22] : memref<128x128xbf16, #tpu.memory_space<vmem>>, vector<128x128xbf16>
    tpu.vector_store %arg9[%c0_21, %c0_22], %47 {strides = array<i32>} : memref<128x128xbf16, #tpu.memory_space<vmem>>, vector<128x128xbf16>,
    return
  }
  func.func @transform_0(%arg0: i32) -> (i32, i32) {
    %c0_i32 = arith.constant 0 : i32
    %c0_i32_0 = arith.constant 0 : i32
    return %arg0, %c0_i32 : i32, i32
  }
  func.func @transform_1(%arg0: i32) -> (i32, i32) {
    %c0_i32 = arith.constant 0 : i32
    %c0_i32_0 = arith.constant 0 : i32
    return %arg0, %c0_i32 : i32, i32
  }
  func.func @transform_2(%arg0: i32) -> (i32, i32) {
    %c0_i32 = arith.constant 0 : i32
    %c0_i32_0 = arith.constant 0 : i32
    %c0_i32_1 = arith.constant 0 : i32
    return %c0_i32, %c0_i32_0 : i32, i32
  }
  func.func @transform_3(%arg0: i32) -> (i32, i32) {
    %c0_i32 = arith.constant 0 : i32
    %c0_i32_0 = arith.constant 0 : i32
    %c0_i32_1 = arith.constant 0 : i32
    return %c0_i32, %c0_i32_0 : i32, i32
  }
  func.func @transform_4(%arg0: i32) -> (i32, i32) {
    %c0_i32 = arith.constant 0 : i32
    %c0_i32_0 = arith.constant 0 : i32
    %c0_i32_1 = arith.constant 0 : i32
    return %c0_i32, %c0_i32_0 : i32, i32
  }
  func.func @transform_5(%arg0: i32) -> (i32, i32) {
    %c0_i32 = arith.constant 0 : i32
    %c0_i32_0 = arith.constant 0 : i32
    %c0_i32_1 = arith.constant 0 : i32
    return %c0_i32, %c0_i32_0 : i32, i32
  }
  func.func @transform_6(%arg0: i32) -> (i32, i32) {
    %c0_i32 = arith.constant 0 : i32
    %c0_i32_0 = arith.constant 0 : i32
    %c0_i32_1 = arith.constant 0 : i32
    return %c0_i32, %c0_i32_0 : i32, i32
  }
  func.func @transform_7(%arg0: i32) -> (i32, i32) {
    %c0_i32 = arith.constant 0 : i32
    %c0_i32_0 = arith.constant 0 : i32
    %c0_i32_1 = arith.constant 0 : i32
    return %c0_i32, %c0_i32_0 : i32, i32
  }
  func.func @transform_8(%arg0: i32) -> (i32, i32) {
    %c0_i32 = arith.constant 0 : i32
    %c0_i32_0 = arith.constant 0 : i32
    return %arg0, %c0_i32 : i32, i32
  }
}

</mosaic_0001>

<llo_original>
// kernel: tpu_custom_call.1
$region0: #{tpu_custom_call.1}
  #allocation0 [shape = 'u32[]', space=smem, size = 0x4, offset = 0x4, fixed_abs, tag = 'smem constant byte address 0x4 - core index']
  #allocation1 [shape = 'u32[144,128]{1,0:T(1,128)}', space=vmem, size = 0x12000, scoped, tag = 'internal scratch']
  %s0 = inlined_call_operand.hbm [shape: bf16[256,128], index: 0, kind: input, shape index: {}]
  %s1 = inlined_call_operand.hbm [shape: bf16[256,128], index: 1, kind: input, shape index: {}]
  %s2 = inlined_call_operand.hbm [shape: bf16[128,128], index: 2, kind: input, shape index: {}]
  %s3 = inlined_call_operand.vmem [shape: f32[1,128], index: 3, kind: input, shape index: {}]
  %s4 = inlined_call_operand.hbm [shape: bf16[128,128], index: 4, kind: input, shape index: {}]
  %s5 = inlined_call_operand.vmem [shape: f32[1,128], index: 5, kind: input, shape index: {}]
  %s6 = inlined_call_operand.vmem [shape: f32[1,128], index: 6, kind: input, shape index: {}]
  %s7 = inlined_call_operand.vmem [shape: f32[1,128], index: 7, kind: input, shape index: {}]
  %s8 = inlined_call_operand.hbm [shape: bf16[256,128], index: 8, kind: output, shape index: {}]
  %s9 = sld [smem:[#allocation0]]
  $region81: #{tpu_custom_call.1} parent=0
    _
  %s11 = ssub.s32 1, %s9
  %s12 = scalar_select 0, %s11, %s9
  $region1: #{tpu_custom_call.1} parent=0
    #allocation2 [shape = 'u8[65536]{0}', space=vmem, size = 0x10000, scoped, tag = 'input window, operand 0']
    #allocation3 [shape = 's32[2]{0}', space=sflag, size = 0x8, scoped, tag = 'scoped memory for tpu_custom_call.1']
    #allocation4 [shape = 's32[2]{0}', space=sflag, size = 0x8, scoped, tag = 'scoped memory for tpu_custom_call.1']
    #allocation5 [shape = 'u8[65536]{0}', space=vmem, size = 0x10000, scoped, tag = 'input window, operand 1']
    #allocation6 [shape = 's32[2]{0}', space=sflag, size = 0x8, scoped, tag = 'scoped memory for tpu_custom_call.1']
    #allocation7 [shape = 'u8[32768]{0}', space=vmem, size = 0x8000, scoped, tag = 'input window, operand 2, single buffered']
    #allocation8 [shape = 'u8[32768]{0}', space=vmem, size = 0x8000, scoped, tag = 'input window, operand 4, single buffered']
    #allocation9 [shape = 's32[1]{0}', space=sflag, size = 0x4, scoped, tag = 'scoped memory for tpu_custom_call.1']
    #allocation10 [shape = 'u8[65536]{0}', space=vmem, size = 0x10000, scoped, tag = 'output window, operand 0']
    %13 = vsyncpa [#allocation3], 0
    %s14 = scalar_lea.sflag [#allocation3], 1
    %15 = vsyncpa %s14, 0
    %16 = vsyncpa [#allocation6], 0
    %s17 = scalar_lea.sflag [#allocation6], 1
    %18 = vsyncpa %s17, 0
    %19 = vsyncpa [#allocation9], 0
    %20 = vsyncpa [#allocation4], 0
    %s21 = scalar_lea.sflag [#allocation4], 1
    %22 = vsyncpa %s21, 0
    loop: start=0, step=1, limit=4
    $region2: #{tpu_custom_call.1} parent=1 // loop_pre_header
      _
    $region3: #{tpu_custom_call.1} parent=1 // loop_header
      %s24 = sphi 0, %s28
      %p25 = scmp.ge.s32.totalorder %s24, 4
      %s34 = sphi 0, %s36
      %s37 = sphi 0, %s34
      %s38 = sphi 0, %s37
      %s54 = sphi 0, %s38
      %s60 = sphi 0, %s62
      %s63 = sphi 0, %s60
      %s64 = sphi 0, %s63
      %s80 = sphi 0, %s64
      %s84 = sphi 0, %s84
      %s86 = sphi 0, %s84
      %s87 = sphi 0, %s86
      %s101 = sphi 0, %s87
      %s105 = sphi 0, %s105
      %s107 = sphi 0, %s105
      %s108 = sphi 0, %s107
      %s122 = sphi 0, %s108
      %s126 = sphi 0, %s126
      %s128 = sphi 0, %s126
      %s129 = sphi 0, %s128
      %s143 = sphi 0, %s129
      %s147 = sphi 0, %s147
      %s149 = sphi 0, %s147
      %s150 = sphi 0, %s149
      %s164 = sphi 0, %s150
      %s168 = sphi 0, %s168
      %s170 = sphi 0, %s168
      %s171 = sphi 0, %s170
      %s185 = sphi 0, %s171
      %s189 = sphi 0, %s189
      %s191 = sphi 0, %s189
      %s192 = sphi 0, %s191
      %s206 = sphi 0, %s192
      %s212 = sphi 0, %s214
      %s215 = sphi 0, %s212
      %s216 = sphi 0, %s215
      %s232 = sphi 0, %s216
    $region4: #{tpu_custom_call.1} parent=1 // loop_header_branch
      %27 = sbr.rel (%p25) target = $region8
    $region5: #{tpu_custom_call.1} parent=1 // loop_body
      %s29 = ssub.s32 %s24, 1
      %s30 = ssub.s32 %s24, 2
      %s31 = sadd.s32 %s24, 1
      %s32 = ssub.s32 %s24, %s31
      %p33 = scmp.eq.s32.totalorder %s32, 0
      %s35 = sadd.s32 %s34, 1
      %s36 = scalar_select %p33, %s34, %s35
      %p39 = pneg %p33
      %p40 = scmp.eq.s32.totalorder %s24, 1
      %p41 = por %p39, %p40
      %p42 = scmp.ne.s32.totalorder %s34, %s37
      %p43 = scmp.eq.s32.totalorder %s24, 0
      %p44 = por %p42, %p43
      %p45 = scmp.ne.s32.totalorder %s34, %s37
      %p46 = scmp.eq.s32.totalorder %s29, 1
      %p47 = por %p45, %p46
      %p48 = scmp.ne.s32.totalorder %s37, %s38
      %p49 = scmp.eq.s32.totalorder %s29, 0
      %p50 = por %p48, %p49
      %p51 = scmp.ne.s32.totalorder %s37, %s38
      %p52 = scmp.eq.s32.totalorder %s30, 1
      %p53 = por %p51, %p52
      %p55 = scmp.ne.s32.totalorder %s38, %s54
      %p56 = scmp.eq.s32.totalorder %s30, 0
      %p57 = por %p55, %p56
      %s58 = ssub.s32 %s24, %s31
      %p59 = scmp.eq.s32.totalorder %s58, 0
      %s61 = sadd.s32 %s60, 1
      %s62 = scalar_select %p59, %s60, %s61
      %p65 = pneg %p59
      %p66 = scmp.eq.s32.totalorder %s24, 1
      %p67 = por %p65, %p66
      %p68 = scmp.ne.s32.totalorder %s60, %s63
      %p69 = scmp.eq.s32.totalorder %s24, 0
      %p70 = por %p68, %p69
      %p71 = scmp.ne.s32.totalorder %s60, %s63
      %p72 = scmp.eq.s32.totalorder %s29, 1
      %p73 = por %p71, %p72
      %p74 = scmp.ne.s32.totalorder %s63, %s64
      %p75 = scmp.eq.s32.totalorder %s29, 0
      %p76 = por %p74, %p75
      %p77 = scmp.ne.s32.totalorder %s63, %s64
      %p78 = scmp.eq.s32.totalorder %s30, 1
      %p79 = por %p77, %p78
      %p81 = scmp.ne.s32.totalorder %s64, %s80
      %p82 = scmp.eq.s32.totalorder %s30, 0
      %p83 = por %p81, %p82
      %s85 = sadd.s32 %s84, 1
      %p88 = scmp.eq.s32.totalorder %s24, 1
      %p89 = scmp.ne.s32.totalorder %s84, %s86
      %p90 = scmp.eq.s32.totalorder %s24, 0
      %p91 = por %p89, %p90
      %p92 = scmp.ne.s32.totalorder %s84, %s86
      %p93 = scmp.eq.s32.totalorder %s29, 1
      %p94 = por %p92, %p93
      %p95 = scmp.ne.s32.totalorder %s86, %s87
      %p96 = scmp.eq.s32.totalorder %s29, 0
      %p97 = por %p95, %p96
      %p98 = scmp.ne.s32.totalorder %s86, %s87
      %p99 = scmp.eq.s32.totalorder %s30, 1
      %p100 = por %p98, %p99
      %p102 = scmp.ne.s32.totalorder %s87, %s101
      %p103 = scmp.eq.s32.totalorder %s30, 0
      %p104 = por %p102, %p103
      %s106 = sadd.s32 %s105, 1
      %p109 = scmp.eq.s32.totalorder %s24, 1
      %p110 = scmp.ne.s32.totalorder %s105, %s107
      %p111 = scmp.eq.s32.totalorder %s24, 0
      %p112 = por %p110, %p111
      %p113 = scmp.ne.s32.totalorder %s105, %s107
      %p114 = scmp.eq.s32.totalorder %s29, 1
      %p115 = por %p113, %p114
      %p116 = scmp.ne.s32.totalorder %s107, %s108
      %p117 = scmp.eq.s32.totalorder %s29, 0
      %p118 = por %p116, %p117
      %p119 = scmp.ne.s32.totalorder %s107, %s108
      %p120 = scmp.eq.s32.totalorder %s30, 1
      %p121 = por %p119, %p120
      %p123 = scmp.ne.s32.totalorder %s108, %s122
      %p124 = scmp.eq.s32.totalorder %s30, 0
      %p125 = por %p123, %p124
      %s127 = sadd.s32 %s126, 1
      %p130 = scmp.eq.s32.totalorder %s24, 1
      %p131 = scmp.ne.s32.totalorder %s126, %s128
      %p132 = scmp.eq.s32.totalorder %s24, 0
      %p133 = por %p131, %p132
      %p134 = scmp.ne.s32.totalorder %s126, %s128
      %p135 = scmp.eq.s32.totalorder %s29, 1
      %p136 = por %p134, %p135
      %p137 = scmp.ne.s32.totalorder %s128, %s129
      %p138 = scmp.eq.s32.totalorder %s29, 0
      %p139 = por %p137, %p138
      %p140 = scmp.ne.s32.totalorder %s128, %s129
      %p141 = scmp.eq.s32.totalorder %s30, 1
      %p142 = por %p140, %p141
      %p144 = scmp.ne.s32.totalorder %s129, %s143
      %p145 = scmp.eq.s32.totalorder %s30, 0
      %p146 = por %p144, %p145
      %s148 = sadd.s32 %s147, 1
      %p151 = scmp.eq.s32.totalorder %s24, 1
      %p152 = scmp.ne.s32.totalorder %s147, %s149
      %p153 = scmp.eq.s32.totalorder %s24, 0
      %p154 = por %p152, %p153
      %p155 = scmp.ne.s32.totalorder %s147, %s149
      %p156 = scmp.eq.s32.totalorder %s29, 1
      %p157 = por %p155, %p156
      %p158 = scmp.ne.s32.totalorder %s149, %s150
      %p159 = scmp.eq.s32.totalorder %s29, 0
      %p160 = por %p158, %p159
      %p161 = scmp.ne.s32.totalorder %s149, %s150
      %p162 = scmp.eq.s32.totalorder %s30, 1
      %p163 = por %p161, %p162
      %p165 = scmp.ne.s32.totalorder %s150, %s164
      %p166 = scmp.eq.s32.totalorder %s30, 0
      %p167 = por %p165, %p166
      %s169 = sadd.s32 %s168, 1
      %p172 = scmp.eq.s32.totalorder %s24, 1
      %p173 = scmp.ne.s32.totalorder %s168, %s170
      %p174 = scmp.eq.s32.totalorder %s24, 0
      %p175 = por %p173, %p174
      %p176 = scmp.ne.s32.totalorder %s168, %s170
      %p177 = scmp.eq.s32.totalorder %s29, 1
      %p178 = por %p176, %p177
      %p179 = scmp.ne.s32.totalorder %s170, %s171
      %p180 = scmp.eq.s32.totalorder %s29, 0
      %p181 = por %p179, %p180
      %p182 = scmp.ne.s32.totalorder %s170, %s171
      %p183 = scmp.eq.s32.totalorder %s30, 1
      %p184 = por %p182, %p183
      %p186 = scmp.ne.s32.totalorder %s171, %s185
      %p187 = scmp.eq.s32.totalorder %s30, 0
      %p188 = por %p186, %p187
      %s190 = sadd.s32 %s189, 1
      %p193 = scmp.eq.s32.totalorder %s24, 1
      %p194 = scmp.ne.s32.totalorder %s189, %s191
      %p195 = scmp.eq.s32.totalorder %s24, 0
      %p196 = por %p194, %p195
      %p197 = scmp.ne.s32.totalorder %s189, %s191
      %p198 = scmp.eq.s32.totalorder %s29, 1
      %p199 = por %p197, %p198
      %p200 = scmp.ne.s32.totalorder %s191, %s192
      %p201 = scmp.eq.s32.totalorder %s29, 0
      %p202 = por %p200, %p201
      %p203 = scmp.ne.s32.totalorder %s191, %s192
      %p204 = scmp.eq.s32.totalorder %s30, 1
      %p205 = por %p203, %p204
      %p207 = scmp.ne.s32.totalorder %s192, %s206
      %p208 = scmp.eq.s32.totalorder %s30, 0
      %p209 = por %p207, %p208
      %s210 = ssub.s32 %s24, %s31
      %p211 = scmp.eq.s32.totalorder %s210, 0
      %s213 = sadd.s32 %s212, 1
      %s214 = scalar_select %p211, %s212, %s213
      %p217 = pneg %p211
      %p218 = scmp.eq.s32.totalorder %s24, 1
      %p219 = por %p217, %p218
      %p220 = scmp.ne.s32.totalorder %s212, %s215
      %p221 = scmp.eq.s32.totalorder %s24, 0
      %p222 = por %p220, %p221
      %p223 = scmp.ne.s32.totalorder %s212, %s215
      %p224 = scmp.eq.s32.totalorder %s29, 1
      %p225 = por %p223, %p224
      %p226 = scmp.ne.s32.totalorder %s215, %s216
      %p227 = scmp.eq.s32.totalorder %s29, 0
      %p228 = por %p226, %p227
      %p229 = scmp.ne.s32.totalorder %s215, %s216
      %p230 = scmp.eq.s32.totalorder %s30, 1
      %p231 = por %p229, %p230
      %p233 = scmp.ne.s32.totalorder %s216, %s232
      %p234 = scmp.eq.s32.totalorder %s30, 0
      %p235 = por %p233, %p234
      %p236 = scmp.le.s32.totalorder 1, %s24
      %p237 = scmp.lt.s32.totalorder %s24, 3
      %p238 = pnand %p236, %p237
      %p239 = pneg %p238
      // Predicated region
      $region9: #{tpu_custom_call.1} parent=5 // pred_check
        _
      $region10: #{tpu_custom_call.1} parent=5 // pred_check_branch
        %241 = sbr.rel (%p238) target = $region12
      $region11: #{tpu_custom_call.1} parent=5 // pred_region
        %s242 = ssub.s32 %s24, 1
        // Predicated region
        $region13: #{tpu_custom_call.1} parent=11 // pred_check
          %p243 = pneg %p97
        $region14: #{tpu_custom_call.1} parent=11 // pred_check_branch
          %245 = sbr.rel (%p243) target = $region16
        $region15: #{tpu_custom_call.1} parent=11 // pred_region
          %s247 = ssub.s32 1024, 1024
          %248 = vsyncadd [#allocation6], %s247
          %s249 = sshll.u32 [#allocation7], 4
          %s250 = int_to_ptr.vmem [resolvable:$true] %s249
          %255 = dma.hbm_to_vmem [thread:$0]  %s2, 1024, %s250, [#allocation6], 64, 64, 4
        $region16: #{tpu_custom_call.1} parent=11 // pred_fallthru
          _
        // Predicated region
        $region17: #{tpu_custom_call.1} parent=11 // pred_check
          %p256 = pneg %p118
        $region18: #{tpu_custom_call.1} parent=11 // pred_check_branch
          %258 = sbr.rel (%p256) target = $region20
        $region19: #{tpu_custom_call.1} parent=11 // pred_region
          _
        $region20: #{tpu_custom_call.1} parent=11 // pred_fallthru
          _
        // Predicated region
        $region21: #{tpu_custom_call.1} parent=11 // pred_check
          %p259 = pneg %p139
        $region22: #{tpu_custom_call.1} parent=11 // pred_check_branch
          %261 = sbr.rel (%p259) target = $region24
        $region23: #{tpu_custom_call.1} parent=11 // pred_region
          %s263 = ssub.s32 1024, 1024
          %264 = vsyncadd [#allocation9], %s263
          %s265 = sshll.u32 [#allocation8], 4
          %s266 = int_to_ptr.vmem [resolvable:$true] %s265
          %271 = dma.hbm_to_vmem [thread:$0]  %s4, 1024, %s266, [#allocation9], 64, 64, 4
        $region24: #{tpu_custom_call.1} parent=11 // pred_fallthru
          _
        // Predicated region
        $region25: #{tpu_custom_call.1} parent=11 // pred_check
          %p272 = pneg %p160
        $region26: #{tpu_custom_call.1} parent=11 // pred_check_branch
          %274 = sbr.rel (%p272) target = $region28
        $region27: #{tpu_custom_call.1} parent=11 // pred_region
          _
        $region28: #{tpu_custom_call.1} parent=11 // pred_fallthru
          _
        // Predicated region
        $region29: #{tpu_custom_call.1} parent=11 // pred_check
          %p275 = pneg %p181
        $region30: #{tpu_custom_call.1} parent=11 // pred_check_branch
          %277 = sbr.rel (%p275) target = $region32
        $region31: #{tpu_custom_call.1} parent=11 // pred_region
          _
        $region32: #{tpu_custom_call.1} parent=11 // pred_fallthru
          _
        // Predicated region
        $region33: #{tpu_custom_call.1} parent=11 // pred_check
          %p278 = pneg %p202
        $region34: #{tpu_custom_call.1} parent=11 // pred_check_branch
          %280 = sbr.rel (%p278) target = $region36
        $region35: #{tpu_custom_call.1} parent=11 // pred_region
          _
        $region36: #{tpu_custom_call.1} parent=11 // pred_fallthru
          _
      $region12: #{tpu_custom_call.1} parent=5 // pred_fallthru
        _
      %p281 = scmp.lt.s32.totalorder %s24, 2
      // Predicated region
      $region37: #{tpu_custom_call.1} parent=5 // pred_check
        %p282 = pneg %p281
      $region38: #{tpu_custom_call.1} parent=5 // pred_check_branch
        %284 = sbr.rel (%p282) target = $region40
      $region39: #{tpu_custom_call.1} parent=5 // pred_region
        // Predicated region
        $region41: #{tpu_custom_call.1} parent=39 // pred_check
          %p285 = pneg %p44
        $region42: #{tpu_custom_call.1} parent=39 // pred_check_branch
          %287 = sbr.rel (%p285) target = $region44
        $region43: #{tpu_custom_call.1} parent=39 // pred_region
          %s288 = sand.u32 %s34, 1
          %s289 = scalar_lea.sflag [#allocation3], %s288
          %s290 = sand.u32 %s34, 1
          %s291 = smul.addr %s290, 64
          %s292 = scalar_lea.vmem [#allocation2], %s291
          %s293 = smul.u32 16, %s24
          %s295 = ssub.s32 1024, 1024
          %296 = vsyncadd %s289, %s295
          %s297 = smul.addr %s293, 64
          %s298 = scalar_lea.hbm %s0, %s297
          %s299 = sshll.u32 %s292, 4
          %s300 = int_to_ptr.vmem [resolvable:$true] %s299
          %305 = dma.hbm_to_vmem [thread:$0]  %s298, 1024, %s300, %s289, 64, 64, 4
        $region44: #{tpu_custom_call.1} parent=39 // pred_fallthru
          _
        // Predicated region
        $region45: #{tpu_custom_call.1} parent=39 // pred_check
          %p306 = pneg %p70
        $region46: #{tpu_custom_call.1} parent=39 // pred_check_branch
          %308 = sbr.rel (%p306) target = $region48
        $region47: #{tpu_custom_call.1} parent=39 // pred_region
          %s309 = sand.u32 %s24, 1
          %s310 = scalar_lea.sflag [#allocation6], %s309
          %s311 = sand.u32 %s60, 1
          %s312 = smul.addr %s311, 64
          %s313 = scalar_lea.vmem [#allocation5], %s312
          %s314 = smul.u32 16, %s24
          %s316 = ssub.s32 1024, 1024
          %317 = vsyncadd %s310, %s316
          %s318 = smul.addr %s314, 64
          %s319 = scalar_lea.hbm %s1, %s318
          %s320 = sshll.u32 %s313, 4
          %s321 = int_to_ptr.vmem [resolvable:$true] %s320
          %326 = dma.hbm_to_vmem [thread:$0]  %s319, 1024, %s321, %s310, 64, 64, 4
        $region48: #{tpu_custom_call.1} parent=39 // pred_fallthru
          _
      $region40: #{tpu_custom_call.1} parent=5 // pred_fallthru
        _
      %p327 = scmp.le.s32.totalorder 1, %s24
      %p328 = scmp.lt.s32.totalorder %s24, 3
      %p329 = pnand %p327, %p328
      %p330 = pneg %p329
      // Predicated region
      $region49: #{tpu_custom_call.1} parent=5 // pred_check
        _
      $region50: #{tpu_custom_call.1} parent=5 // pred_check_branch
        %332 = sbr.rel (%p329) target = $region52
      $region51: #{tpu_custom_call.1} parent=5 // pred_region
        %s333 = ssub.s32 %s24, 1
        %s334 = sand.u32 %s37, 1
        %s335 = scalar_lea.sflag [#allocation3], %s334
        %s336 = sand.u32 %s37, 1
        %s337 = smul.addr %s336, 64
        %s338 = scalar_lea.vmem [#allocation2], %s337
        // Predicated region
        $region53: #{tpu_custom_call.1} parent=51 // pred_check
          %p339 = pneg %p50
        $region54: #{tpu_custom_call.1} parent=51 // pred_check_branch
          %341 = sbr.rel (%p339) target = $region56
        $region55: #{tpu_custom_call.1} parent=51 // pred_region
          %342 = dma.done %s335, 1024
        $region56: #{tpu_custom_call.1} parent=51 // pred_fallthru
          _
        %s343 = sand.u32 %s29, 1
        %s344 = scalar_lea.sflag [#allocation6], %s343
        %s345 = sand.u32 %s63, 1
        %s346 = smul.addr %s345, 64
        %s347 = scalar_lea.vmem [#allocation5], %s346
        // Predicated region
        $region57: #{tpu_custom_call.1} parent=51 // pred_check
          %p348 = pneg %p76
        $region58: #{tpu_custom_call.1} parent=51 // pred_check_branch
          %350 = sbr.rel (%p348) target = $region60
        $region59: #{tpu_custom_call.1} parent=51 // pred_region
          %351 = dma.done %s344, 1024
        $region60: #{tpu_custom_call.1} parent=51 // pred_fallthru
          _
        // Predicated region
        $region61: #{tpu_custom_call.1} parent=51 // pred_check
          %p352 = pneg %p97
        $region62: #{tpu_custom_call.1} parent=51 // pred_check_branch
          %354 = sbr.rel (%p352) target = $region64
        $region63: #{tpu_custom_call.1} parent=51 // pred_region
          %355 = dma.done [#allocation6], 1024
        $region64: #{tpu_custom_call.1} parent=51 // pred_fallthru
          _
        // Predicated region
        $region65: #{tpu_custom_call.1} parent=51 // pred_check
          %p356 = pneg %p139
        $region66: #{tpu_custom_call.1} parent=51 // pred_check_branch
          %358 = sbr.rel (%p356) target = $region68
        $region67: #{tpu_custom_call.1} parent=51 // pred_region
          %359 = dma.done [#allocation9], 1024
        $region68: #{tpu_custom_call.1} parent=51 // pred_fallthru
          _
        %s360 = sand.u32 %s37, 1
        %s361 = scalar_lea.sflag [#allocation3], %s360
        %s362 = sand.u32 %s37, 1
        %s363 = smul.addr %s362, 64
        %s364 = scalar_lea.vmem [#allocation2], %s363
        %p365 = pneg %p50
        %p366 = pneg %p47
        %s367 = sand.u32 %s29, 1
        %s368 = scalar_lea.sflag [#allocation6], %s367
        %s369 = sand.u32 %s63, 1
        %s370 = smul.addr %s369, 64
        %s371 = scalar_lea.vmem [#allocation5], %s370
        %p372 = pneg %p76
        %p373 = pneg %p73
        %p374 = pneg %p97
        %p375 = pneg %p94
        %p376 = pneg %p118
        %p377 = pneg %p115
        %p378 = pneg %p139
        %p379 = pneg %p136
        %p380 = pneg %p160
        %p381 = pneg %p157
        %p382 = pneg %p181
        %p383 = pneg %p178
        %p384 = pneg %p202
        %p385 = pneg %p199
        %p386 = pneg %p228
        %p387 = pneg %p225
        %s388 = sand.u32 %s215, 1
        %s389 = scalar_lea.sflag [#allocation4], %s388
        %s390 = sand.u32 %s215, 1
        %s391 = smul.addr %s390, 64
        %s392 = scalar_lea.vmem [#allocation10], %s391
        %s393 = smul.u32 16, %s29
        %s394 = smul.u32 16, %s29
        %s395 = smul.u32 16, %s29
        %v397 = vld [vmem:[%s338] sm:$0xf]
        %v398 = vld [vmem:[%s338 + $0x4] sm:$0xf]
        %v399 = vld [vmem:[%s338 + $0x8] sm:$0xf]
        %v400 = vld [vmem:[%s338 + $0xc] sm:$0xf]
        %v401 = vld [vmem:[%s338 + $0x10] sm:$0xf]
        %v402 = vld [vmem:[%s338 + $0x14] sm:$0xf]
        %v403 = vld [vmem:[%s338 + $0x18] sm:$0xf]
        %v404 = vld [vmem:[%s338 + $0x1c] sm:$0xf]
        %v405 = vld [vmem:[%s338 + $0x20] sm:$0xf]
        %v406 = vld [vmem:[%s338 + $0x24] sm:$0xf]
        %v407 = vld [vmem:[%s338 + $0x28] sm:$0xf]
        %v408 = vld [vmem:[%s338 + $0x2c] sm:$0xf]
        %v409 = vld [vmem:[%s338 + $0x30] sm:$0xf]
        %v410 = vld [vmem:[%s338 + $0x34] sm:$0xf]
        %v411 = vld [vmem:[%s338 + $0x38] sm:$0xf]
        %v412 = vld [vmem:[%s338 + $0x3c] sm:$0xf]
        %v413 = vld [vmem:[#allocation7] sm:$0xf]
        %v414 = vld [vmem:[#allocation7 + $0x4] sm:$0xf]
        %v415 = vld [vmem:[#allocation7 + $0x8] sm:$0xf]
        %v416 = vld [vmem:[#allocation7 + $0xc] sm:$0xf]
        %v417 = vld [vmem:[#allocation7 + $0x10] sm:$0xf]
        %v418 = vld [vmem:[#allocation7 + $0x14] sm:$0xf]
        %v419 = vld [vmem:[#allocation7 + $0x18] sm:$0xf]
        %v420 = vld [vmem:[#allocation7 + $0x1c] sm:$0xf]
        %v421 = vld [vmem:[#allocation7 + $0x20] sm:$0xf]
        %v422 = vld [vmem:[#allocation7 + $0x24] sm:$0xf]
        %v423 = vld [vmem:[#allocation7 + $0x28] sm:$0xf]
        %v424 = vld [vmem:[#allocation7 + $0x2c] sm:$0xf]
        %v425 = vld [vmem:[#allocation7 + $0x30] sm:$0xf]
        %v426 = vld [vmem:[#allocation7 + $0x34] sm:$0xf]
        %v427 = vld [vmem:[#allocation7 + $0x38] sm:$0xf]
        %v428 = vld [vmem:[#allocation7 + $0x3c] sm:$0xf]
        %v429 = vld [vmem:[%s3] sm:$0x1]
        %v431 = vlaneseq
        %v432 = vshrl.u32 %v431, 7
        %v433 = vsub.s32 0, %v432
        %v434 = vrot.slane %v429, %v433
        %v452 = vunpack.c.l.b16 %v397
        %v453 = vunpack.c.l.b16 %v398
        %v454 = vunpack.c.l.b16 %v399
        %v455 = vunpack.c.l.b16 %v400
        %v456 = vunpack.c.l.b16 %v401
        %v457 = vunpack.c.l.b16 %v402
        %v458 = vunpack.c.l.b16 %v403
        %v459 = vunpack.c.l.b16 %v404
        %v460 = vunpack.c.l.b16 %v405
        %v461 = vunpack.c.l.b16 %v406
        %v462 = vunpack.c.l.b16 %v407
        %v463 = vunpack.c.l.b16 %v408
        %v464 = vunpack.c.l.b16 %v409
        %v465 = vunpack.c.l.b16 %v410
        %v466 = vunpack.c.l.b16 %v411
        %v467 = vunpack.c.l.b16 %v412
        %v468 = vpack.c.b16 %v453, %v452
        %v469 = vpack.c.b16 %v455, %v454
        %v470 = vpack.c.b16 %v457, %v456
        %v471 = vpack.c.b16 %v459, %v458
        %v472 = vpack.c.b16 %v461, %v460
        %v473 = vpack.c.b16 %v463, %v462
        %v474 = vpack.c.b16 %v465, %v464
        %v475 = vpack.c.b16 %v467, %v466
        %v500 = vunpack.c.l.b16 %v413
        %v501 = vunpack.c.l.b16 %v414
        %v502 = vunpack.c.l.b16 %v415
        %v503 = vunpack.c.l.b16 %v416
        %v504 = vunpack.c.l.b16 %v417
        %v505 = vunpack.c.l.b16 %v418
        %v506 = vunpack.c.l.b16 %v419
        %v507 = vunpack.c.l.b16 %v420
        %v508 = vunpack.c.l.b16 %v421
        %v509 = vunpack.c.l.b16 %v422
        %v510 = vunpack.c.l.b16 %v423
        %v511 = vunpack.c.l.b16 %v424
        %v512 = vunpack.c.l.b16 %v425
        %v513 = vunpack.c.l.b16 %v426
        %v514 = vunpack.c.l.b16 %v427
        %v515 = vunpack.c.l.b16 %v428
        %v516 = vpack.c.b16 %v501, %v500
        %v517 = vpack.c.b16 %v503, %v502
        %v518 = vpack.c.b16 %v505, %v504
        %v519 = vpack.c.b16 %v507, %v506
        %v520 = vpack.c.b16 %v509, %v508
        %v521 = vpack.c.b16 %v511, %v510
        %v522 = vpack.c.b16 %v513, %v512
        %v523 = vpack.c.b16 %v515, %v514
        %532 = vmatprep.subr.bf16.mxu0 0
        %533 = vmatpush1.bf16.msra.mxu0 %v516
        %534 = vmatprep.subr.bf16.mxu0 0
        %535 = vmatpush1.bf16.msra.mxu0 %v517
        %536 = vmatprep.subr.bf16.mxu0 0
        %537 = vmatpush1.bf16.msra.mxu0 %v518
        %538 = vmatprep.subr.bf16.mxu0 0
        %539 = vmatpush1.bf16.msra.mxu0 %v519
        %540 = vmatprep.subr.bf16.mxu0 0
        %541 = vmatpush1.bf16.msra.mxu0 %v520
        %542 = vmatprep.subr.bf16.mxu0 0
        %543 = vmatpush1.bf16.msra.mxu0 %v521
        %544 = vmatprep.subr.bf16.mxu0 0
        %545 = vmatpush1.bf16.msra.mxu0 %v522
        %546 = vmatprep.subr.bf16.mxu0 0
        %547 = vmatpush1.bf16.msra.mxu0 %v523
        %548 = vmatprep.subr.bf16.mxu0 0
        %549 = vmatpush1.bf16.msra.mxu0 0
        %550 = vmatprep.subr.bf16.mxu0 0
        %551 = vmatpush1.bf16.msra.mxu0 0
        %552 = vmatprep.subr.bf16.mxu0 0
        %553 = vmatpush1.bf16.msra.mxu0 0
        %554 = vmatprep.subr.bf16.mxu0 0
        %555 = vmatpush1.bf16.msra.mxu0 0
        %556 = vmatprep.subr.bf16.mxu0 0
        %557 = vmatpush1.bf16.msra.mxu0 0
        %558 = vmatprep.subr.bf16.mxu0 0
        %559 = vmatpush1.bf16.msra.mxu0 0
        %560 = vmatprep.subr.bf16.mxu0 0
        %561 = vmatpush1.bf16.msra.mxu0 0
        %562 = vmatprep.subr.bf16.mxu0 0
        %563 = vmatpush1.bf16.msra.mxu0 0
        %564 = vmatprep.mubr.bf16.mxu0 0
        %565 = vmatmul.mubr.bf16.gmra.mrb[0].mxu0 %v468
        %v566 = vpop.f32.mrb[0].mxu0
        %v567 = vadd.f32 %v434, %v566
        %v568 = vpop.f32.mrb[0].mxu0
        %v569 = vpop.f32.mrb[0].mxu0
        %v570 = vadd.f32 %v434, %v569
        %v571 = vpop.f32.mrb[0].mxu0
        %572 = vmatprep.mubr.bf16.mxu0 0
        %573 = vmatmul.mubr.bf16.gmra.mrb[0].mxu0 %v469
        %v574 = vpop.f32.mrb[0].mxu0
        %v575 = vadd.f32 %v434, %v574
        %v576 = vpop.f32.mrb[0].mxu0
        %v577 = vpop.f32.mrb[0].mxu0
        %v578 = vadd.f32 %v434, %v577
        %v579 = vpop.f32.mrb[0].mxu0
        %580 = vmatprep.mubr.bf16.mxu0 0
        %581 = vmatmul.mubr.bf16.gmra.mrb[0].mxu0 %v470
        %v582 = vpop.f32.mrb[0].mxu0
        %v583 = vadd.f32 %v434, %v582
        %v584 = vpop.f32.mrb[0].mxu0
        %v585 = vpop.f32.mrb[0].mxu0
        %v586 = vadd.f32 %v434, %v585
        %v587 = vpop.f32.mrb[0].mxu0
        %588 = vmatprep.mubr.bf16.mxu0 0
        %589 = vmatmul.mubr.bf16.gmra.mrb[0].mxu0 %v471
        %v590 = vpop.f32.mrb[0].mxu0
        %v591 = vadd.f32 %v434, %v590
        %v592 = vpop.f32.mrb[0].mxu0
        %v593 = vpop.f32.mrb[0].mxu0
        %v594 = vadd.f32 %v434, %v593
        %v595 = vpop.f32.mrb[0].mxu0
        %596 = vmatprep.mubr.bf16.mxu0 0
        %597 = vmatmul.mubr.bf16.gmra.mrb[0].mxu0 %v472
        %v598 = vpop.f32.mrb[0].mxu0
        %v599 = vadd.f32 %v434, %v598
        %v600 = vpop.f32.mrb[0].mxu0
        %v601 = vpop.f32.mrb[0].mxu0
        %v602 = vadd.f32 %v434, %v601
        %v603 = vpop.f32.mrb[0].mxu0
        %604 = vmatprep.mubr.bf16.mxu0 0
        %605 = vmatmul.mubr.bf16.gmra.mrb[0].mxu0 %v473
        %v606 = vpop.f32.mrb[0].mxu0
        %v607 = vadd.f32 %v434, %v606
        %v608 = vpop.f32.mrb[0].mxu0
        %v609 = vpop.f32.mrb[0].mxu0
        %v610 = vadd.f32 %v434, %v609
        %v611 = vpop.f32.mrb[0].mxu0
        %612 = vmatprep.mubr.bf16.mxu0 0
        %613 = vmatmul.mubr.bf16.gmra.mrb[0].mxu0 %v474
        %v614 = vpop.f32.mrb[0].mxu0
        %v615 = vadd.f32 %v434, %v614
        %v616 = vpop.f32.mrb[0].mxu0
        %v617 = vpop.f32.mrb[0].mxu0
        %v618 = vadd.f32 %v434, %v617
        %v619 = vpop.f32.mrb[0].mxu0
        %620 = vmatprep.mubr.bf16.mxu0 0
        %621 = vmatmul.mubr.bf16.gmra.mrb[0].mxu0 %v475
        %v622 = vpop.f32.mrb[0].mxu0
        %v623 = vadd.f32 %v434, %v622
        %v624 = vpop.f32.mrb[0].mxu0
        %v625 = vpop.f32.mrb[0].mxu0
        %v626 = vadd.f32 %v434, %v625
        %v627 = vpop.f32.mrb[0].mxu0
        %628 = vdwg.mxu0
        %v629 = vld [vmem:[%s347] sm:$0xf]
        %v630 = vld [vmem:[%s347 + $0x4] sm:$0xf]
        %v631 = vld [vmem:[%s347 + $0x8] sm:$0xf]
        %v632 = vld [vmem:[%s347 + $0xc] sm:$0xf]
        %v633 = vld [vmem:[%s347 + $0x10] sm:$0xf]
        %v634 = vld [vmem:[%s347 + $0x14] sm:$0xf]
        %v635 = vld [vmem:[%s347 + $0x18] sm:$0xf]
        %v636 = vld [vmem:[%s347 + $0x1c] sm:$0xf]
        %v637 = vld [vmem:[%s347 + $0x20] sm:$0xf]
        %v638 = vld [vmem:[%s347 + $0x24] sm:$0xf]
        %v639 = vld [vmem:[%s347 + $0x28] sm:$0xf]
        %v640 = vld [vmem:[%s347 + $0x2c] sm:$0xf]
        %v641 = vld [vmem:[%s347 + $0x30] sm:$0xf]
        %v642 = vld [vmem:[%s347 + $0x34] sm:$0xf]
        %v643 = vld [vmem:[%s347 + $0x38] sm:$0xf]
        %v644 = vld [vmem:[%s347 + $0x3c] sm:$0xf]
        %v645 = vld [vmem:[#allocation8] sm:$0xf]
        %v646 = vld [vmem:[#allocation8 + $0x4] sm:$0xf]
        %v647 = vld [vmem:[#allocation8 + $0x8] sm:$0xf]
        %v648 = vld [vmem:[#allocation8 + $0xc] sm:$0xf]
        %v649 = vld [vmem:[#allocation8 + $0x10] sm:$0xf]
        %v650 = vld [vmem:[#allocation8 + $0x14] sm:$0xf]
        %v651 = vld [vmem:[#allocation8 + $0x18] sm:$0xf]
        %v652 = vld [vmem:[#allocation8 + $0x1c] sm:$0xf]
        %v653 = vld [vmem:[#allocation8 + $0x20] sm:$0xf]
        %v654 = vld [vmem:[#allocation8 + $0x24] sm:$0xf]
        %v655 = vld [vmem:[#allocation8 + $0x28] sm:$0xf]
        %v656 = vld [vmem:[#allocation8 + $0x2c] sm:$0xf]
        %v657 = vld [vmem:[#allocation8 + $0x30] sm:$0xf]
        %v658 = vld [vmem:[#allocation8 + $0x34] sm:$0xf]
        %v659 = vld [vmem:[#allocation8 + $0x38] sm:$0xf]
        %v660 = vld [vmem:[#allocation8 + $0x3c] sm:$0xf]
        %v661 = vld [vmem:[%s5] sm:$0x1]
        %v663 = vlaneseq
        %v664 = vshrl.u32 %v663, 7
        %v665 = vsub.s32 0, %v664
        %v666 = vrot.slane %v661, %v665
        %v684 = vunpack.c.l.b16 %v629
        %v685 = vunpack.c.l.b16 %v630
        %v686 = vunpack.c.l.b16 %v631
        %v687 = vunpack.c.l.b16 %v632
        %v688 = vunpack.c.l.b16 %v633
        %v689 = vunpack.c.l.b16 %v634
        %v690 = vunpack.c.l.b16 %v635
        %v691 = vunpack.c.l.b16 %v636
        %v692 = vunpack.c.l.b16 %v637
        %v693 = vunpack.c.l.b16 %v638
        %v694 = vunpack.c.l.b16 %v639
        %v695 = vunpack.c.l.b16 %v640
        %v696 = vunpack.c.l.b16 %v641
        %v697 = vunpack.c.l.b16 %v642
        %v698 = vunpack.c.l.b16 %v643
        %v699 = vunpack.c.l.b16 %v644
        %v700 = vpack.c.b16 %v685, %v684
        %v701 = vpack.c.b16 %v687, %v686
        %v702 = vpack.c.b16 %v689, %v688
        %v703 = vpack.c.b16 %v691, %v690
        %v704 = vpack.c.b16 %v693, %v692
        %v705 = vpack.c.b16 %v695, %v694
        %v706 = vpack.c.b16 %v697, %v696
        %v707 = vpack.c.b16 %v699, %v698
        %v732 = vunpack.c.l.b16 %v645
        %v733 = vunpack.c.l.b16 %v646
        %v734 = vunpack.c.l.b16 %v647
        %v735 = vunpack.c.l.b16 %v648
        %v736 = vunpack.c.l.b16 %v649
        %v737 = vunpack.c.l.b16 %v650
        %v738 = vunpack.c.l.b16 %v651
        %v739 = vunpack.c.l.b16 %v652
        %v740 = vunpack.c.l.b16 %v653
        %v741 = vunpack.c.l.b16 %v654
        %v742 = vunpack.c.l.b16 %v655
        %v743 = vunpack.c.l.b16 %v656
        %v744 = vunpack.c.l.b16 %v657
        %v745 = vunpack.c.l.b16 %v658
        %v746 = vunpack.c.l.b16 %v659
        %v747 = vunpack.c.l.b16 %v660
        %v748 = vpack.c.b16 %v733, %v732
        %v749 = vpack.c.b16 %v735, %v734
        %v750 = vpack.c.b16 %v737, %v736
        %v751 = vpack.c.b16 %v739, %v738
        %v752 = vpack.c.b16 %v741, %v740
        %v753 = vpack.c.b16 %v743, %v742
        %v754 = vpack.c.b16 %v745, %v744
        %v755 = vpack.c.b16 %v747, %v746
        %764 = vmatprep.subr.bf16.mxu0 0
        %765 = vmatpush1.bf16.msra.mxu0 %v748
        %766 = vmatprep.subr.bf16.mxu0 0
        %767 = vmatpush1.bf16.msra.mxu0 %v749
        %768 = vmatprep.subr.bf16.mxu0 0
        %769 = vmatpush1.bf16.msra.mxu0 %v750
        %770 = vmatprep.subr.bf16.mxu0 0
        %771 = vmatpush1.bf16.msra.mxu0 %v751
        %772 = vmatprep.subr.bf16.mxu0 0
        %773 = vmatpush1.bf16.msra.mxu0 %v752
        %774 = vmatprep.subr.bf16.mxu0 0
        %775 = vmatpush1.bf16.msra.mxu0 %v753
        %776 = vmatprep.subr.bf16.mxu0 0
        %777 = vmatpush1.bf16.msra.mxu0 %v754
        %778 = vmatprep.subr.bf16.mxu0 0
        %779 = vmatpush1.bf16.msra.mxu0 %v755
        %780 = vmatprep.subr.bf16.mxu0 0
        %781 = vmatpush1.bf16.msra.mxu0 0
        %782 = vmatprep.subr.bf16.mxu0 0
        %783 = vmatpush1.bf16.msra.mxu0 0
        %784 = vmatprep.subr.bf16.mxu0 0
        %785 = vmatpush1.bf16.msra.mxu0 0
        %786 = vmatprep.subr.bf16.mxu0 0
        %787 = vmatpush1.bf16.msra.mxu0 0
        %788 = vmatprep.subr.bf16.mxu0 0
        %789 = vmatpush1.bf16.msra.mxu0 0
        %790 = vmatprep.subr.bf16.mxu0 0
        %791 = vmatpush1.bf16.msra.mxu0 0
        %792 = vmatprep.subr.bf16.mxu0 0
        %793 = vmatpush1.bf16.msra.mxu0 0
        %794 = vmatprep.subr.bf16.mxu0 0
        %795 = vmatpush1.bf16.msra.mxu0 0
        %796 = vmatprep.mubr.bf16.mxu0 0
        %797 = vmatmul.mubr.bf16.gmra.mrb[0].mxu0 %v700
        %v798 = vpop.f32.mrb[0].mxu0
        %v799 = vadd.f32 %v666, %v798
        %v800 = vpop.f32.mrb[0].mxu0
        %v801 = vpop.f32.mrb[0].mxu0
        %v802 = vadd.f32 %v666, %v801
        %v803 = vpop.f32.mrb[0].mxu0
        %804 = vmatprep.mubr.bf16.mxu0 0
        %805 = vmatmul.mubr.bf16.gmra.mrb[0].mxu0 %v701
        %v806 = vpop.f32.mrb[0].mxu0
        %v807 = vadd.f32 %v666, %v806
        %v808 = vpop.f32.mrb[0].mxu0
        %v809 = vpop.f32.mrb[0].mxu0
        %v810 = vadd.f32 %v666, %v809
        %v811 = vpop.f32.mrb[0].mxu0
        %812 = vmatprep.mubr.bf16.mxu0 0
        %813 = vmatmul.mubr.bf16.gmra.mrb[0].mxu0 %v702
        %v814 = vpop.f32.mrb[0].mxu0
        %v815 = vadd.f32 %v666, %v814
        %v816 = vpop.f32.mrb[0].mxu0
        %v817 = vpop.f32.mrb[0].mxu0
        %v818 = vadd.f32 %v666, %v817
        %v819 = vpop.f32.mrb[0].mxu0
        %820 = vmatprep.mubr.bf16.mxu0 0
        %821 = vmatmul.mubr.bf16.gmra.mrb[0].mxu0 %v703
        %v822 = vpop.f32.mrb[0].mxu0
        %v823 = vadd.f32 %v666, %v822
        %v824 = vpop.f32.mrb[0].mxu0
        %v825 = vpop.f32.mrb[0].mxu0
        %v826 = vadd.f32 %v666, %v825
        %v827 = vpop.f32.mrb[0].mxu0
        %828 = vmatprep.mubr.bf16.mxu0 0
        %829 = vmatmul.mubr.bf16.gmra.mrb[0].mxu0 %v704
        %v830 = vpop.f32.mrb[0].mxu0
        %v831 = vadd.f32 %v666, %v830
        %v832 = vpop.f32.mrb[0].mxu0
        %v833 = vpop.f32.mrb[0].mxu0
        %v834 = vadd.f32 %v666, %v833
        %v835 = vpop.f32.mrb[0].mxu0
        %836 = vmatprep.mubr.bf16.mxu0 0
        %837 = vmatmul.mubr.bf16.gmra.mrb[0].mxu0 %v705
        %v838 = vpop.f32.mrb[0].mxu0
        %v839 = vadd.f32 %v666, %v838
        %v840 = vpop.f32.mrb[0].mxu0
        %v841 = vpop.f32.mrb[0].mxu0
        %v842 = vadd.f32 %v666, %v841
        %v843 = vpop.f32.mrb[0].mxu0
        %844 = vmatprep.mubr.bf16.mxu0 0
        %845 = vmatmul.mubr.bf16.gmra.mrb[0].mxu0 %v706
        %v846 = vpop.f32.mrb[0].mxu0
        %v847 = vadd.f32 %v666, %v846
        %v848 = vpop.f32.mrb[0].mxu0
        %v849 = vpop.f32.mrb[0].mxu0
        %v850 = vadd.f32 %v666, %v849
        %v851 = vpop.f32.mrb[0].mxu0
        %852 = vmatprep.mubr.bf16.mxu0 0
        %853 = vmatmul.mubr.bf16.gmra.mrb[0].mxu0 %v707
        %v854 = vpop.f32.mrb[0].mxu0
        %v855 = vadd.f32 %v666, %v854
        %v856 = vpop.f32.mrb[0].mxu0
        %v857 = vpop.f32.mrb[0].mxu0
        %v858 = vadd.f32 %v666, %v857
        %v859 = vpop.f32.mrb[0].mxu0
        %860 = vdwg.mxu0
        %v861 = vlaneseq
        %v862 = vand.u32 %v861, 127
        %vm863 = vcmp.ge.s32.totalorder %v862, 4
        %vm864 = vcmp.lt.s32.totalorder %v862, 8
        %vm865 = vmand %vm863, %vm864
        %v866 = vsel %vm865, 1, 0
        %v867 = vcvt.s32.f32 %v866
        %v868 = vmul.f32 %v799, %v867
        %v869 = vmul.f32 %v802, %v867
        %v870 = vmul.f32 %v807, %v867
        %v871 = vmul.f32 %v810, %v867
        %v872 = vmul.f32 %v815, %v867
        %v873 = vmul.f32 %v818, %v867
        %v874 = vmul.f32 %v823, %v867
        %v875 = vmul.f32 %v826, %v867
        %v876 = vmul.f32 %v831, %v867
        %v877 = vmul.f32 %v834, %v867
        %v878 = vmul.f32 %v839, %v867
        %v879 = vmul.f32 %v842, %v867
        %v880 = vmul.f32 %v847, %v867
        %v881 = vmul.f32 %v850, %v867
        %v882 = vmul.f32 %v855, %v867
        %v883 = vmul.f32 %v858, %v867
        %884 = vadd.xlane.f32.xlu0 %v868
        %v885 = vpop.xlane.xlu0 %884
        %886 = vadd.xlane.f32.xlu0 %v869
        %v887 = vpop.xlane.xlu0 %886
        %888 = vadd.xlane.f32.xlu0 %v870
        %v889 = vpop.xlane.xlu0 %888
        %890 = vadd.xlane.f32.xlu0 %v871
        %v891 = vpop.xlane.xlu0 %890
        %892 = vadd.xlane.f32.xlu0 %v872
        %v893 = vpop.xlane.xlu0 %892
        %894 = vadd.xlane.f32.xlu0 %v873
        %v895 = vpop.xlane.xlu0 %894
        %896 = vadd.xlane.f32.xlu0 %v874
        %v897 = vpop.xlane.xlu0 %896
        %898 = vadd.xlane.f32.xlu0 %v875
        %v899 = vpop.xlane.xlu0 %898
        %900 = vadd.xlane.f32.xlu0 %v876
        %v901 = vpop.xlane.xlu0 %900
        %902 = vadd.xlane.f32.xlu0 %v877
        %v903 = vpop.xlane.xlu0 %902
        %904 = vadd.xlane.f32.xlu0 %v878
        %v905 = vpop.xlane.xlu0 %904
        %906 = vadd.xlane.f32.xlu0 %v879
        %v907 = vpop.xlane.xlu0 %906
        %908 = vadd.xlane.f32.xlu0 %v880
        %v909 = vpop.xlane.xlu0 %908
        %910 = vadd.xlane.f32.xlu0 %v881
        %v911 = vpop.xlane.xlu0 %910
        %912 = vadd.xlane.f32.xlu0 %v882
        %v913 = vpop.xlane.xlu0 %912
        %914 = vadd.xlane.f32.xlu0 %v883
        %v915 = vpop.xlane.xlu0 %914
        %v916 = vmul.f32 %v885, 0.25
        %v917 = vmul.f32 %v887, 0.25
        %v918 = vmul.f32 %v889, 0.25
        %v919 = vmul.f32 %v891, 0.25
        %v920 = vmul.f32 %v893, 0.25
        %v921 = vmul.f32 %v895, 0.25
        %v922 = vmul.f32 %v897, 0.25
        %v923 = vmul.f32 %v899, 0.25
        %v924 = vmul.f32 %v901, 0.25
        %v925 = vmul.f32 %v903, 0.25
        %v926 = vmul.f32 %v905, 0.25
        %v927 = vmul.f32 %v907, 0.25
        %v928 = vmul.f32 %v909, 0.25
        %v929 = vmul.f32 %v911, 0.25
        %v930 = vmul.f32 %v913, 0.25
        %v931 = vmul.f32 %v915, 0.25
        %v932 = vsub.f32 %v799, %v916
        %v933 = vsub.f32 %v802, %v917
        %v934 = vsub.f32 %v807, %v918
        %v935 = vsub.f32 %v810, %v919
        %v936 = vsub.f32 %v815, %v920
        %v937 = vsub.f32 %v818, %v921
        %v938 = vsub.f32 %v823, %v922
        %v939 = vsub.f32 %v826, %v923
        %v940 = vsub.f32 %v831, %v924
        %v941 = vsub.f32 %v834, %v925
        %v942 = vsub.f32 %v839, %v926
        %v943 = vsub.f32 %v842, %v927
        %v944 = vsub.f32 %v847, %v928
        %v945 = vsub.f32 %v850, %v929
        %v946 = vsub.f32 %v855, %v930
        %v947 = vsub.f32 %v858, %v931
        %v948 = vmul.f32 %v932, %v932
        %v949 = vmul.f32 %v933, %v933
        %v950 = vmul.f32 %v934, %v934
        %v951 = vmul.f32 %v935, %v935
        %v952 = vmul.f32 %v936, %v936
        %v953 = vmul.f32 %v937, %v937
        %v954 = vmul.f32 %v938, %v938
        %v955 = vmul.f32 %v939, %v939
        %v956 = vmul.f32 %v940, %v940
        %v957 = vmul.f32 %v941, %v941
        %v958 = vmul.f32 %v942, %v942
        %v959 = vmul.f32 %v943, %v943
        %v960 = vmul.f32 %v944, %v944
        %v961 = vmul.f32 %v945, %v945
        %v962 = vmul.f32 %v946, %v946
        %v963 = vmul.f32 %v947, %v947
        %v964 = vmul.f32 %v948, %v867
        %v965 = vmul.f32 %v949, %v867
        %v966 = vmul.f32 %v950, %v867
        %v967 = vmul.f32 %v951, %v867
        %v968 = vmul.f32 %v952, %v867
        %v969 = vmul.f32 %v953, %v867
        %v970 = vmul.f32 %v954, %v867
        %v971 = vmul.f32 %v955, %v867
        %v972 = vmul.f32 %v956, %v867
        %v973 = vmul.f32 %v957, %v867
        %v974 = vmul.f32 %v958, %v867
        %v975 = vmul.f32 %v959, %v867
        %v976 = vmul.f32 %v960, %v867
        %v977 = vmul.f32 %v961, %v867
        %v978 = vmul.f32 %v962, %v867
        %v979 = vmul.f32 %v963, %v867
        %980 = vadd.xlane.f32.xlu0 %v964
        %v981 = vpop.xlane.xlu0 %980
        %982 = vadd.xlane.f32.xlu0 %v965
        %v983 = vpop.xlane.xlu0 %982
        %984 = vadd.xlane.f32.xlu0 %v966
        %v985 = vpop.xlane.xlu0 %984
        %986 = vadd.xlane.f32.xlu0 %v967
        %v987 = vpop.xlane.xlu0 %986
        %988 = vadd.xlane.f32.xlu0 %v968
        %v989 = vpop.xlane.xlu0 %988
        %990 = vadd.xlane.f32.xlu0 %v969
        %v991 = vpop.xlane.xlu0 %990
        %992 = vadd.xlane.f32.xlu0 %v970
        %v993 = vpop.xlane.xlu0 %992
        %994 = vadd.xlane.f32.xlu0 %v971
        %v995 = vpop.xlane.xlu0 %994
        %996 = vadd.xlane.f32.xlu0 %v972
        %v997 = vpop.xlane.xlu0 %996
        %998 = vadd.xlane.f32.xlu0 %v973
        %v999 = vpop.xlane.xlu0 %998
        %1000 = vadd.xlane.f32.xlu0 %v974
        %v1001 = vpop.xlane.xlu0 %1000
        %1002 = vadd.xlane.f32.xlu0 %v975
        %v1003 = vpop.xlane.xlu0 %1002
        %1004 = vadd.xlane.f32.xlu0 %v976
        %v1005 = vpop.xlane.xlu0 %1004
        %1006 = vadd.xlane.f32.xlu0 %v977
        %v1007 = vpop.xlane.xlu0 %1006
        %1008 = vadd.xlane.f32.xlu0 %v978
        %v1009 = vpop.xlane.xlu0 %1008
        %1010 = vadd.xlane.f32.xlu0 %v979
        %v1011 = vpop.xlane.xlu0 %1010
        %v1012 = vmul.f32 %v981, 0.25
        %v1013 = vmul.f32 %v983, 0.25
        %v1014 = vmul.f32 %v985, 0.25
        %v1015 = vmul.f32 %v987, 0.25
        %v1016 = vmul.f32 %v989, 0.25
        %v1017 = vmul.f32 %v991, 0.25
        %v1018 = vmul.f32 %v993, 0.25
        %v1019 = vmul.f32 %v995, 0.25
        %v1020 = vmul.f32 %v997, 0.25
        %v1021 = vmul.f32 %v999, 0.25
        %v1022 = vmul.f32 %v1001, 0.25
        %v1023 = vmul.f32 %v1003, 0.25
        %v1024 = vmul.f32 %v1005, 0.25
        %v1025 = vmul.f32 %v1007, 0.25
        %v1026 = vmul.f32 %v1009, 0.25
        %v1027 = vmul.f32 %v1011, 0.25
        %v1028 = vadd.f32 %v1012, 1e-05
        %v1029 = vadd.f32 %v1013, 1e-05
        %v1030 = vadd.f32 %v1014, 1e-05
        %v1031 = vadd.f32 %v1015, 1e-05
        %v1032 = vadd.f32 %v1016, 1e-05
        %v1033 = vadd.f32 %v1017, 1e-05
        %v1034 = vadd.f32 %v1018, 1e-05
        %v1035 = vadd.f32 %v1019, 1e-05
        %v1036 = vadd.f32 %v1020, 1e-05
        %v1037 = vadd.f32 %v1021, 1e-05
        %v1038 = vadd.f32 %v1022, 1e-05
        %v1039 = vadd.f32 %v1023, 1e-05
        %v1040 = vadd.f32 %v1024, 1e-05
        %v1041 = vadd.f32 %v1025, 1e-05
        %v1042 = vadd.f32 %v1026, 1e-05
        %v1043 = vadd.f32 %v1027, 1e-05
        %v1044 = vrsqrt.pop %v1028
        %v1045 = vrsqrt.pop %v1029
        %v1046 = vrsqrt.pop %v1030
        %v1047 = vrsqrt.pop %v1031
        %v1048 = vrsqrt.pop %v1032
        %v1049 = vrsqrt.pop %v1033
        %v1050 = vrsqrt.pop %v1034
        %v1051 = vrsqrt.pop %v1035
        %v1052 = vrsqrt.pop %v1036
        %v1053 = vrsqrt.pop %v1037
        %v1054 = vrsqrt.pop %v1038
        %v1055 = vrsqrt.pop %v1039
        %v1056 = vrsqrt.pop %v1040
        %v1057 = vrsqrt.pop %v1041
        %v1058 = vrsqrt.pop %v1042
        %v1059 = vrsqrt.pop %v1043
        %v1060 = vmul.f32 %v932, %v1044
        %v1061 = vmul.f32 %v933, %v1045
        %v1062 = vmul.f32 %v934, %v1046
        %v1063 = vmul.f32 %v935, %v1047
        %v1064 = vmul.f32 %v936, %v1048
        %v1065 = vmul.f32 %v937, %v1049
        %v1066 = vmul.f32 %v938, %v1050
        %v1067 = vmul.f32 %v939, %v1051
        %v1068 = vmul.f32 %v940, %v1052
        %v1069 = vmul.f32 %v941, %v1053
        %v1070 = vmul.f32 %v942, %v1054
        %v1071 = vmul.f32 %v943, %v1055
        %v1072 = vmul.f32 %v944, %v1056
        %v1073 = vmul.f32 %v945, %v1057
        %v1074 = vmul.f32 %v946, %v1058
        %v1075 = vmul.f32 %v947, %v1059
        %v1076 = vld [vmem:[%s6] sm:$0x1]
        %v1078 = vlaneseq
        %v1079 = vshrl.u32 %v1078, 7
        %v1080 = vsub.s32 0, %v1079
        %v1081 = vrot.slane %v1076, %v1080
        %v1083 = vmul.f32 %v1060, %v1081
        %v1084 = vmul.f32 %v1061, %v1081
        %v1085 = vmul.f32 %v1062, %v1081
        %v1086 = vmul.f32 %v1063, %v1081
        %v1087 = vmul.f32 %v1064, %v1081
        %v1088 = vmul.f32 %v1065, %v1081
        %v1089 = vmul.f32 %v1066, %v1081
        %v1090 = vmul.f32 %v1067, %v1081
        %v1091 = vmul.f32 %v1068, %v1081
        %v1092 = vmul.f32 %v1069, %v1081
        %v1093 = vmul.f32 %v1070, %v1081
        %v1094 = vmul.f32 %v1071, %v1081
        %v1095 = vmul.f32 %v1072, %v1081
        %v1096 = vmul.f32 %v1073, %v1081
        %v1097 = vmul.f32 %v1074, %v1081
        %v1098 = vmul.f32 %v1075, %v1081
        %v1099 = vld [vmem:[%s7] sm:$0x1]
        %v1101 = vlaneseq
        %v1102 = vshrl.u32 %v1101, 7
        %v1103 = vsub.s32 0, %v1102
        %v1104 = vrot.slane %v1099, %v1103
        %v1106 = vadd.f32 %v1083, %v1104
        %v1107 = vadd.f32 %v1084, %v1104
        %v1108 = vadd.f32 %v1085, %v1104
        %v1109 = vadd.f32 %v1086, %v1104
        %v1110 = vadd.f32 %v1087, %v1104
        %v1111 = vadd.f32 %v1088, %v1104
        %v1112 = vadd.f32 %v1089, %v1104
        %v1113 = vadd.f32 %v1090, %v1104
        %v1114 = vadd.f32 %v1091, %v1104
        %v1115 = vadd.f32 %v1092, %v1104
        %v1116 = vadd.f32 %v1093, %v1104
        %v1117 = vadd.f32 %v1094, %v1104
        %v1118 = vadd.f32 %v1095, %v1104
        %v1119 = vadd.f32 %v1096, %v1104
        %v1120 = vadd.f32 %v1097, %v1104
        %v1121 = vadd.f32 %v1098, %v1104
        %v1122 = vadd.f32 %v567, %v1106
        %v1123 = vadd.f32 %v570, %v1107
        %v1124 = vadd.f32 %v575, %v1108
        %v1125 = vadd.f32 %v578, %v1109
        %v1126 = vadd.f32 %v583, %v1110
        %v1127 = vadd.f32 %v586, %v1111
        %v1128 = vadd.f32 %v591, %v1112
        %v1129 = vadd.f32 %v594, %v1113
        %v1130 = vadd.f32 %v599, %v1114
        %v1131 = vadd.f32 %v602, %v1115
        %v1132 = vadd.f32 %v607, %v1116
        %v1133 = vadd.f32 %v610, %v1117
        %v1134 = vadd.f32 %v615, %v1118
        %v1135 = vadd.f32 %v618, %v1119
        %v1136 = vadd.f32 %v623, %v1120
        %v1137 = vadd.f32 %v626, %v1121
        %v1138 = vpack.c.bf16 %v1123, %v1122
        %v1139 = vpack.c.bf16 %v1125, %v1124
        %v1140 = vpack.c.bf16 %v1127, %v1126
        %v1141 = vpack.c.bf16 %v1129, %v1128
        %v1142 = vpack.c.bf16 %v1131, %v1130
        %v1143 = vpack.c.bf16 %v1133, %v1132
        %v1144 = vpack.c.bf16 %v1135, %v1134
        %v1145 = vpack.c.bf16 %v1137, %v1136
        %v1154 = vunpack.c.l.b16 %v1138
        %v1155 = vunpack.c.h.b16 %v1138
        %v1156 = vunpack.c.l.b16 %v1139
        %v1157 = vunpack.c.h.b16 %v1139
        %v1158 = vunpack.c.l.b16 %v1140
        %v1159 = vunpack.c.h.b16 %v1140
        %v1160 = vunpack.c.l.b16 %v1141
        %v1161 = vunpack.c.h.b16 %v1141
        %v1162 = vunpack.c.l.b16 %v1142
        %v1163 = vunpack.c.h.b16 %v1142
        %v1164 = vunpack.c.l.b16 %v1143
        %v1165 = vunpack.c.h.b16 %v1143
        %v1166 = vunpack.c.l.b16 %v1144
        %v1167 = vunpack.c.h.b16 %v1144
        %v1168 = vunpack.c.l.b16 %v1145
        %v1169 = vunpack.c.h.b16 %v1145
        %v1170 = vpack.c.b16 %v1154, %v1154
        %v1171 = vpack.c.b16 %v1155, %v1155
        %v1172 = vpack.c.b16 %v1156, %v1156
        %v1173 = vpack.c.b16 %v1157, %v1157
        %v1174 = vpack.c.b16 %v1158, %v1158
        %v1175 = vpack.c.b16 %v1159, %v1159
        %v1176 = vpack.c.b16 %v1160, %v1160
        %v1177 = vpack.c.b16 %v1161, %v1161
        %v1178 = vpack.c.b16 %v1162, %v1162
        %v1179 = vpack.c.b16 %v1163, %v1163
        %v1180 = vpack.c.b16 %v1164, %v1164
        %v1181 = vpack.c.b16 %v1165, %v1165
        %v1182 = vpack.c.b16 %v1166, %v1166
        %v1183 = vpack.c.b16 %v1167, %v1167
        %v1184 = vpack.c.b16 %v1168, %v1168
        %v1185 = vpack.c.b16 %v1169, %v1169
        %1202 = vst [vmem:[%s392] sm:$0xf] %v1170
        %1203 = vst [vmem:[%s392 + $0x4] sm:$0xf] %v1171
        %1204 = vst [vmem:[%s392 + $0x8] sm:$0xf] %v1172
        %1205 = vst [vmem:[%s392 + $0xc] sm:$0xf] %v1173
        %1206 = vst [vmem:[%s392 + $0x10] sm:$0xf] %v1174
        %1207 = vst [vmem:[%s392 + $0x14] sm:$0xf] %v1175
        %1208 = vst [vmem:[%s392 + $0x18] sm:$0xf] %v1176
        %1209 = vst [vmem:[%s392 + $0x1c] sm:$0xf] %v1177
        %1210 = vst [vmem:[%s392 + $0x20] sm:$0xf] %v1178
        %1211 = vst [vmem:[%s392 + $0x24] sm:$0xf] %v1179
        %1212 = vst [vmem:[%s392 + $0x28] sm:$0xf] %v1180
        %1213 = vst [vmem:[%s392 + $0x2c] sm:$0xf] %v1181
        %1214 = vst [vmem:[%s392 + $0x30] sm:$0xf] %v1182
        %1215 = vst [vmem:[%s392 + $0x34] sm:$0xf] %v1183
        %1216 = vst [vmem:[%s392 + $0x38] sm:$0xf] %v1184
        %1217 = vst [vmem:[%s392 + $0x3c] sm:$0xf] %v1185
        %s1218 = sand.u32 %s215, 1
        %s1219 = scalar_lea.sflag [#allocation4], %s1218
        %s1220 = sand.u32 %s215, 1
        %s1221 = smul.addr %s1220, 64
        %s1222 = scalar_lea.vmem [#allocation10], %s1221
        // Predicated region
        $region69: #{tpu_custom_call.1} parent=51 // pred_check
          %p1223 = pneg %p225
        $region70: #{tpu_custom_call.1} parent=51 // pred_check_branch
          %1225 = sbr.rel (%p1223) target = $region72
        $region71: #{tpu_custom_call.1} parent=51 // pred_region
          %s1226 = smul.u32 16, %s29
          %s1228 = ssub.s32 1024, 1024
          %1229 = vsyncadd %s1219, %s1228
          %s1230 = smul.addr %s1226, 64
          %s1231 = scalar_lea.hbm %s8, %s1230
          %s1232 = sshll.u32 %s1222, 4
          %s1233 = int_to_ptr.vmem [resolvable:$true] %s1232
          %1238 = dma.vmem_to_hbm [thread:$0]  %s1233, 1024, %s1231, %s1219, 64, 64, 4
        $region72: #{tpu_custom_call.1} parent=51 // pred_fallthru
          _
      $region52: #{tpu_custom_call.1} parent=5 // pred_fallthru
        _
      %p1239 = scmp.le.s32.totalorder 2, %s24
      // Predicated region
      $region73: #{tpu_custom_call.1} parent=5 // pred_check
        %p1240 = pneg %p1239
      $region74: #{tpu_custom_call.1} parent=5 // pred_check_branch
        %1242 = sbr.rel (%p1240) target = $region76
      $region75: #{tpu_custom_call.1} parent=5 // pred_region
        %s1243 = ssub.s32 %s24, 2
        // Predicated region
        $region77: #{tpu_custom_call.1} parent=75 // pred_check
          %p1244 = pneg %p231
        $region78: #{tpu_custom_call.1} parent=75 // pred_check_branch
          %1246 = sbr.rel (%p1244) target = $region80
        $region79: #{tpu_custom_call.1} parent=75 // pred_region
          %s1247 = sand.u32 %s216, 1
          %s1248 = scalar_lea.sflag [#allocation4], %s1247
          %s1249 = sand.u32 %s216, 1
          %s1250 = smul.addr %s1249, 64
          %s1251 = scalar_lea.vmem [#allocation10], %s1250
          %1252 = dma.done %s1248, 1024
        $region80: #{tpu_custom_call.1} parent=75 // pred_fallthru
          _
      $region76: #{tpu_custom_call.1} parent=5 // pred_fallthru
        _
    $region6: #{tpu_custom_call.1} parent=1 // loop_footer
      %s28 = sadd.s32 1, %s24
    $region7: #{tpu_custom_call.1} parent=1 // loop_footer_branch
      %23 = sbr.rel target = $region3
    $region8: #{tpu_custom_call.1} parent=1 // loop_exit
      _
    %1253 = vsyncpa [#allocation3], 1
    %s1254 = scalar_lea.sflag [#allocation3], 1
    %1255 = vsyncpa %s1254, 1
    %1256 = vsyncpa [#allocation6], 1
    %s1257 = scalar_lea.sflag [#allocation6], 1
    %1258 = vsyncpa %s1257, 1
    %1259 = vsyncpa [#allocation9], 1
    %1260 = vsyncpa [#allocation4], 1
    %s1261 = scalar_lea.sflag [#allocation4], 1
    %1262 = vsyncpa %s1261, 1

</llo_original>
